<compile_context>
chip_gen: v7x
topology: tpu7x:2x2x1
jax: 0.10.0
libtpu: 0.0.40
codegen_flags: <defaults>
</compile_context>

<pallas_src>
import functools
import math

import jax
import jax.numpy as jnp
from jax.experimental import pallas as pl
from jax.experimental.pallas import tpu as pltpu


# ----------------------------- Pallas kernel ------------------------------- #

def _silu(y):
    # sigmoid(y) = 0.5*(1 + tanh(0.5*y)): a single EUP push per element; the
    # extra mul/add rides otherwise-idle VALU slots.
    return y * (0.5 * (1.0 + jnp.tanh(0.5 * y)))


def unigcnii_fwd_kernel(x_ref, a2_ref, w_in_ref, b_in_ref, w_conv_ref,
                        ln_g_ref, ln_b_ref, w_out_ref, b_out_ref, o_ref,
                        *, nlayer, nhid, alpha):
    # ---- convs[0] (Linear nfeat->nhid, zero-padded to 128 lanes) + SiLU ----
    h = jnp.dot(x_ref[...], w_in_ref[...], preferred_element_type=jnp.float32)
    h = _silu(h + b_in_ref[...])
    h0a = alpha * h                           # pre-scaled X0 residual (once)

    # ---- loop-invariant operands hoisted out of the unrolled layer loop ----
    A2 = a2_ref[...]                          # [NPAD, NPAD] bf16, = 2*A folded
    ln_g = ln_g_ref[...]                      # [1, FPAD], (1-alpha)*gamma, 0 on pad
    ln_b = ln_b_ref[...]                      # [1, FPAD], (1-alpha)*beta_ln
    inv_nhid = 1.0 / float(nhid)

    for layer in range(nlayer):               # tiny nlayer -> static unroll
        # Gather/scatter pipeline + degree scalings + residual doubling are all
        # folded into the constant A2; one MXU matmul per layer.
        Xn = jnp.dot(A2, h.astype(jnp.bfloat16),
                     preferred_element_type=jnp.float32)
        # LayerNorm over the real nhid lanes (padded lanes are exactly zero, so
        # the unmasked sums are already sums over real lanes).
        mu = jnp.sum(Xn, axis=-1, keepdims=True) * inv_nhid
        ex2 = jnp.sum(Xn * Xn, axis=-1, keepdims=True) * inv_nhid
        var = ex2 - mu * mu
        # (1-alpha) is folded into ln_g/ln_b; alpha*X0 is h0a. Zero-padded ln_g
        # zeroes the padded lanes after the affine.
        Xi = (Xn - mu) * jax.lax.rsqrt(var + 1e-5) * ln_g + ln_b + h0a
        # (1-beta)*Xi + beta*W(Xi) folded into W' = (1-beta)*I + beta*W.
        h = _silu(jnp.dot(Xi.astype(jnp.bfloat16), w_conv_ref[layer],
                          preferred_element_type=jnp.float32))

    # ---- convs[-1] (Linear nhid->nclass) + log_softmax over real classes ----
    # Padded class columns carry a -1e30 bias so they vanish under softmax.
    logits = jnp.dot(h.astype(jnp.bfloat16), w_out_ref[...],
                     preferred_element_type=jnp.float32) + b_out_ref[...]
    m = jnp.max(logits, axis=-1, keepdims=True)
    z = logits - m
    lse = jnp.log(jnp.sum(jnp.exp(z), axis=-1, keepdims=True))
    o_ref[...] = z - lse


# ------------------------------ wrapper ------------------------------------ #

def unigcnii_forward(x_pad, A2, w_in, b_in, w_conv, ln_g, ln_b, w_out, b_out,
                     *, nlayer, nhid, alpha):
    NPAD, FPAD = x_pad.shape
    kernel = functools.partial(unigcnii_fwd_kernel, nlayer=nlayer, nhid=nhid,
                               alpha=float(alpha))
    args = (x_pad, A2, w_in, b_in, w_conv, ln_g, ln_b, w_out, b_out)
    vmem = pl.BlockSpec(memory_space=pltpu.MemorySpace.VMEM)
    return pl.pallas_call(
        kernel,
        in_specs=[vmem] * len(args),
        out_specs=vmem,
        out_shape=jax.ShapeDtypeStruct((NPAD, FPAD), jnp.float32),
    )(*args)


# ------------------------------ host setup ---------------------------------- #

def xavier_uniform(key, fan_in, fan_out):
    bound = math.sqrt(6.0 / (fan_in + fan_out))
    return jax.random.uniform(key, (fan_in, fan_out), jnp.float32, -bound, bound)


def pad2(a, rows, cols):
    out = jnp.zeros((rows, cols), a.dtype)
    return out.at[:a.shape[0], :a.shape[1]].set(a)


# -------------------------------- main -------------------------------------- #

if __name__ == "__main__":
    key = jax.random.PRNGKey(0)
    N, Eh = 64, 32                                  # vertices / hyperedges
    nfeat, nhid_base, nhead, nclass, nlayer = 16, 8, 4, 8, 2
    nhid = nhid_base * nhead                        # 32
    NPAD = 128                                      # lane-dense padded node dim
    FPAD = 128                                      # lane-dense padded feature dim
    ALPHA, BETA = 0.1, 0.5                          # nn.Parameter init values

    keys = jax.random.split(key, 5 + nlayer)

    # ---- synthetic hypergraph incidence (deterministic), every deg >= 1 ----
    inc = (jax.random.uniform(keys[0], (Eh, N)) < 0.15).astype(jnp.float32)
    inc = inc.at[jnp.arange(Eh), jnp.arange(Eh) % N].set(1.0)   # edges non-empty
    inc = inc.at[jnp.arange(N) % Eh, jnp.arange(N)].set(1.0)    # vertices covered
    edge_card = inc.sum(axis=1)                     # |e|      [Eh]
    vert_deg = inc.sum(axis=0)                      # deg(v)   [N]
    # UniGNN normalization: degV = deg(v)^-1/2 ; degE = (mean_{v in e} deg(v))^-1/2
    degV = vert_deg ** -0.5
    degE = ((inc @ vert_deg) / edge_card) ** -0.5
    # Fold scatter_mean+degE, scatter_sum+degV AND the residual doubling
    # (X = Xv + Xv) into one constant propagation matrix A2 = 2*A.
    Hev = degE[:, None] * (inc / edge_card[:, None])            # [Eh, N]
    Hve = degV[:, None] * inc.T                                 # [N, Eh]
    A2 = pad2(2.0 * (Hve @ Hev), NPAD, NPAD).astype(jnp.bfloat16)  # [128,128]

    # ---- parameters (mirrors module __init__), zero-padded to 128 lanes ----
    W_in = pad2(xavier_uniform(keys[1], nfeat, nhid), FPAD, FPAD).astype(jnp.bfloat16)
    b_in = jnp.zeros((1, FPAD), jnp.float32)
    # W'_l = (1-beta)*I + beta*W_l  (fold of the GCNII identity mixing)
    eye = jnp.eye(FPAD, dtype=jnp.float32)
    W_conv = jnp.stack([
        (1.0 - BETA) * eye
        + BETA * pad2(xavier_uniform(keys[3 + i], nhid, nhid), FPAD, FPAD)
        for i in range(nlayer)]).astype(jnp.bfloat16)           # [L,128,128]
    # (1-alpha) folded into the LayerNorm affine; gamma=1, beta=0 at init.
    ln_g = (jnp.zeros((1, FPAD), jnp.float32).at[:, :nhid].set(1.0)) * (1.0 - ALPHA)
    ln_b = jnp.zeros((1, FPAD), jnp.float32)
    W_out = pad2(xavier_uniform(keys[2], nhid, nclass), FPAD, FPAD).astype(jnp.bfloat16)
    b_out = jnp.full((1, FPAD), -1e30, jnp.float32).at[:, :nclass].set(0.0)

    x = jax.random.normal(keys[3 + nlayer], (N, nfeat), jnp.float32)
    x_pad = pad2(x, NPAD, FPAD).astype(jnp.bfloat16)

    # ---- fused forward (all dropouts are identity at inference) ----
    out_pad = unigcnii_forward(x_pad, A2, W_in, b_in, W_conv, ln_g, ln_b,
                               W_out, b_out,
                               nlayer=nlayer, nhid=nhid, alpha=ALPHA)
    out = out_pad[:N, :nclass]                      # drop padded rows / classes
    jax.block_until_ready(out)
    assert out.shape == (N, nclass)
    assert bool(jnp.all(jnp.isfinite(out)))
    print("KERNEL_OK")
</pallas_src>

<mosaic_0001>
module attributes {stable_mosaic.version = 11 : i64} {
  func.func @unigcnii_fwd_kernel(%arg0: memref<128x128xbf16, #tpu.memory_space<vmem>>, %arg1: memref<128x128xbf16, #tpu.memory_space<vmem>>, %arg2: memref<128x128xbf16, #tpu.memory_space<vmem>>, %arg3: memref<1x128xf32, #tpu.memory_space<vmem>>, %arg4: memref<2x128x128xbf16, #tpu.memory_space<vmem>>, %arg5: memref<1x128xf32, #tpu.memory_space<vmem>>, %arg6: memref<1x128xf32, #tpu.memory_space<vmem>>, %arg7: memref<128x128xbf16, #tpu.memory_space<vmem>>, %arg8: memref<1x128xf32, #tpu.memory_space<vmem>>, %arg9: memref<128x128xf32, #tpu.memory_space<vmem>>) attributes {dimension_semantics = [], scalar_prefetch = 0 : i64, scratch_operands = 0 : i64, tpu.core_type = #tpu.core_type<tc>} {
    %c0 = arith.constant 0 : index
    %c0_0 = arith.constant 0 : index
    %0 = vector.load %arg0[%c0, %c0_0] : memref<128x128xbf16, #tpu.memory_space<vmem>>, vector<128x128xbf16>
    %c0_1 = arith.constant 0 : index
    %c0_2 = arith.constant 0 : index
    %1 = vector.load %arg2[%c0_1, %c0_2] : memref<128x128xbf16, #tpu.memory_space<vmem>>, vector<128x128xbf16>
    %cst = arith.constant dense<0.000000e+00> : vector<128x128xf32>
    %2 = tpu.matmul %0, %1, %cst {dimension_numbers = #tpu.dot_dimension_numbers<[1], [0], [0], [1], [0, 0, 1, 1], [], []>} : vector<128x128xbf16>, vector<128x128xbf16>, vector<128x128xf32> -> vector<128x128xf32>
    %c0_3 = arith.constant 0 : index
    %c0_4 = arith.constant 0 : index
    %3 = vector.load %arg3[%c0_3, %c0_4] : memref<1x128xf32, #tpu.memory_space<vmem>>, vector<1x128xf32>
    %4 = vector.broadcast %3 : vector<1x128xf32> to vector<128x128xf32>
    %5 = arith.addf %2, %4 : vector<128x128xf32>
    %cst_5 = arith.constant 5.000000e-01 : f32
    %6 = vector.broadcast %cst_5 : f32 to vector<128x128xf32>
    %7 = arith.mulf %6, %5 : vector<128x128xf32>
    %8 = math.tanh %7 : vector<128x128xf32>
    %cst_6 = arith.constant 1.000000e+00 : f32
    %9 = vector.broadcast %cst_6 : f32 to vector<128x128xf32>
    %10 = arith.addf %9, %8 : vector<128x128xf32>
    %cst_7 = arith.constant 5.000000e-01 : f32
    %11 = vector.broadcast %cst_7 : f32 to vector<128x128xf32>
    %12 = arith.mulf %11, %10 : vector<128x128xf32>
    %13 = arith.mulf %5, %12 : vector<128x128xf32>
    %cst_8 = arith.constant 1.000000e-01 : f32
    %14 = vector.broadcast %cst_8 : f32 to vector<128x128xf32>
    %15 = arith.mulf %14, %13 : vector<128x128xf32>
    %c0_9 = arith.constant 0 : index
    %c0_10 = arith.constant 0 : index
    %16 = vector.load %arg1[%c0_9, %c0_10] : memref<128x128xbf16, #tpu.memory_space<vmem>>, vector<128x128xbf16>
    %c0_11 = arith.constant 0 : index
    %c0_12 = arith.constant 0 : index
    %17 = vector.load %arg5[%c0_11, %c0_12] : memref<1x128xf32, #tpu.memory_space<vmem>>, vector<1x128xf32>
    %c0_13 = arith.constant 0 : index
    %c0_14 = arith.constant 0 : index
    %18 = vector.load %arg6[%c0_13, %c0_14] : memref<1x128xf32, #tpu.memory_space<vmem>>, vector<1x128xf32>
    %19 = arith.truncf %13 : vector<128x128xf32> to vector<128x128xbf16>
    %cst_15 = arith.constant dense<0.000000e+00> : vector<128x128xf32>
    %20 = tpu.matmul %16, %19, %cst_15 {dimension_numbers = #tpu.dot_dimension_numbers<[1], [0], [0], [1], [0, 0, 1, 1], [], []>} : vector<128x128xbf16>, vector<128x128xbf16>, vector<128x128xf32> -> vector<128x128xf32>
    %cst_16 = arith.constant dense<0.000000e+00> : vector<128xf32>
    %21 = vector.multi_reduction <add>, %20, %cst_16 [1] : vector<128x128xf32> to vector<128xf32>
    %22 = vector.shape_cast %21 : vector<128xf32> to vector<128x1xf32>
    %cst_17 = arith.constant 3.125000e-02 : f32
    %23 = vector.broadcast %cst_17 : f32 to vector<128x1xf32>
    %24 = arith.mulf %22, %23 : vector<128x1xf32>
    %25 = arith.mulf %20, %20 : vector<128x128xf32>
    %cst_18 = arith.constant dense<0.000000e+00> : vector<128xf32>
    %26 = vector.multi_reduction <add>, %25, %cst_18 [1] : vector<128x128xf32> to vector<128xf32>
    %27 = vector.shape_cast %26 : vector<128xf32> to vector<128x1xf32>
    %cst_19 = arith.constant 3.125000e-02 : f32
    %28 = vector.broadcast %cst_19 : f32 to vector<128x1xf32>
    %29 = arith.mulf %27, %28 : vector<128x1xf32>
    %30 = arith.mulf %24, %24 : vector<128x1xf32>
    %31 = arith.subf %29, %30 : vector<128x1xf32>
    %32 = vector.broadcast %24 : vector<128x1xf32> to vector<128x128xf32>
    %33 = arith.subf %20, %32 : vector<128x128xf32>
    %cst_20 = arith.constant 9.99999974E-6 : f32
    %34 = vector.broadcast %cst_20 : f32 to vector<128x1xf32>
    %35 = arith.addf %31, %34 : vector<128x1xf32>
    %36 = math.rsqrt %35 : vector<128x1xf32>
    %37 = vector.broadcast %36 : vector<128x1xf32> to vector<128x128xf32>
    %38 = arith.mulf %33, %37 : vector<128x128xf32>
    %39 = vector.broadcast %17 : vector<1x128xf32> to vector<128x128xf32>
    %40 = arith.mulf %38, %39 : vector<128x128xf32>
    %41 = vector.broadcast %18 : vector<1x128xf32> to vector<128x128xf32>
    %42 = arith.addf %40, %41 : vector<128x128xf32>
    %43 = arith.addf %42, %15 : vector<128x128xf32>
    %44 = arith.truncf %43 : vector<128x128xf32> to vector<128x128xbf16>
    %c0_21 = arith.constant 0 : index
    %c0_22 = arith.constant 0 : index
    %c0_23 = arith.constant 0 : index
    %45 = vector.load %arg4[%c0_21, %c0_22, %c0_23] : memref<2x128x128xbf16, #tpu.memory_space<vmem>>, vector<1x128x128xbf16>
    %46 = vector.shape_cast %45 : vector<1x128x128xbf16> to vector<128x128xbf16>
    %cst_24 = arith.constant dense<0.000000e+00> : vector<128x128xf32>
    %47 = tpu.matmul %44, %46, %cst_24 {dimension_numbers = #tpu.dot_dimension_numbers<[1], [0], [0], [1], [0, 0, 1, 1], [], []>} : vector<128x128xbf16>, vector<128x128xbf16>, vector<128x128xf32> -> vector<128x128xf32>
    %cst_25 = arith.constant 5.000000e-01 : f32
    %48 = vector.broadcast %cst_25 : f32 to vector<128x128xf32>
    %49 = arith.mulf %48, %47 : vector<128x128xf32>
    %50 = math.tanh %49 : vector<128x128xf32>
    %cst_26 = arith.constant 1.000000e+00 : f32
    %51 = vector.broadcast %cst_26 : f32 to vector<128x128xf32>
    %52 = arith.addf %51, %50 : vector<128x128xf32>
    %cst_27 = arith.constant 5.000000e-01 : f32
    %53 = vector.broadcast %cst_27 : f32 to vector<128x128xf32>
    %54 = arith.mulf %53, %52 : vector<128x128xf32>
    %55 = arith.mulf %47, %54 : vector<128x128xf32>
    %56 = arith.truncf %55 : vector<128x128xf32> to vector<128x128xbf16>
    %cst_28 = arith.constant dense<0.000000e+00> : vector<128x128xf32>
    %57 = tpu.matmul %16, %56, %cst_28 {dimension_numbers = #tpu.dot_dimension_numbers<[1], [0], [0], [1], [0, 0, 1, 1], [], []>} : vector<128x128xbf16>, vector<128x128xbf16>, vector<128x128xf32> -> vector<128x128xf32>
    %cst_29 = arith.constant dense<0.000000e+00> : vector<128xf32>
    %58 = vector.multi_reduction <add>, %57, %cst_29 [1] : vector<128x128xf32> to vector<128xf32>
    %59 = vector.shape_cast %58 : vector<128xf32> to vector<128x1xf32>
    %cst_30 = arith.constant 3.125000e-02 : f32
    %60 = vector.broadcast %cst_30 : f32 to vector<128x1xf32>
    %61 = arith.mulf %59, %60 : vector<128x1xf32>
    %62 = arith.mulf %57, %57 : vector<128x128xf32>
    %cst_31 = arith.constant dense<0.000000e+00> : vector<128xf32>
    %63 = vector.multi_reduction <add>, %62, %cst_31 [1] : vector<128x128xf32> to vector<128xf32>
    %64 = vector.shape_cast %63 : vector<128xf32> to vector<128x1xf32>
    %cst_32 = arith.constant 3.125000e-02 : f32
    %65 = vector.broadcast %cst_32 : f32 to vector<128x1xf32>
    %66 = arith.mulf %64, %65 : vector<128x1xf32>
    %67 = arith.mulf %61, %61 : vector<128x1xf32>
    %68 = arith.subf %66, %67 : vector<128x1xf32>
    %69 = vector.broadcast %61 : vector<128x1xf32> to vector<128x128xf32>
    %70 = arith.subf %57, %69 : vector<128x128xf32>
    %cst_33 = arith.constant 9.99999974E-6 : f32
    %71 = vector.broadcast %cst_33 : f32 to vector<128x1xf32>
    %72 = arith.addf %68, %71 : vector<128x1xf32>
    %73 = math.rsqrt %72 : vector<128x1xf32>
    %74 = vector.broadcast %73 : vector<128x1xf32> to vector<128x128xf32>
    %75 = arith.mulf %70, %74 : vector<128x128xf32>
    %76 = vector.broadcast %17 : vector<1x128xf32> to vector<128x128xf32>
    %77 = arith.mulf %75, %76 : vector<128x128xf32>
    %78 = vector.broadcast %18 : vector<1x128xf32> to vector<128x128xf32>
    %79 = arith.addf %77, %78 : vector<128x128xf32>
    %80 = arith.addf %79, %15 : vector<128x128xf32>
    %81 = arith.truncf %80 : vector<128x128xf32> to vector<128x128xbf16>
    %c1 = arith.constant 1 : index
    %c0_34 = arith.constant 0 : index
    %c0_35 = arith.constant 0 : index
    %82 = vector.load %arg4[%c1, %c0_34, %c0_35] : memref<2x128x128xbf16, #tpu.memory_space<vmem>>, vector<1x128x128xbf16>
    %83 = vector.shape_cast %82 : vector<1x128x128xbf16> to vector<128x128xbf16>
    %cst_36 = arith.constant dense<0.000000e+00> : vector<128x128xf32>
    %84 = tpu.matmul %81, %83, %cst_36 {dimension_numbers = #tpu.dot_dimension_numbers<[1], [0], [0], [1], [0, 0, 1, 1], [], []>} : vector<128x128xbf16>, vector<128x128xbf16>, vector<128x128xf32> -> vector<128x128xf32>
    %cst_37 = arith.constant 5.000000e-01 : f32
    %85 = vector.broadcast %cst_37 : f32 to vector<128x128xf32>
    %86 = arith.mulf %85, %84 : vector<128x128xf32>
    %87 = math.tanh %86 : vector<128x128xf32>
    %cst_38 = arith.constant 1.000000e+00 : f32
    %88 = vector.broadcast %cst_38 : f32 to vector<128x128xf32>
    %89 = arith.addf %88, %87 : vector<128x128xf32>
    %cst_39 = arith.constant 5.000000e-01 : f32
    %90 = vector.broadcast %cst_39 : f32 to vector<128x128xf32>
    %91 = arith.mulf %90, %89 : vector<128x128xf32>
    %92 = arith.mulf %84, %91 : vector<128x128xf32>
    %93 = arith.truncf %92 : vector<128x128xf32> to vector<128x128xbf16>
    %c0_40 = arith.constant 0 : index
    %c0_41 = arith.constant 0 : index
    %94 = vector.load %arg7[%c0_40, %c0_41] : memref<128x128xbf16, #tpu.memory_space<vmem>>, vector<128x128xbf16>
    %cst_42 = arith.constant dense<0.000000e+00> : vector<128x128xf32>
    %95 = tpu.matmul %93, %94, %cst_42 {dimension_numbers = #tpu.dot_dimension_numbers<[1], [0], [0], [1], [0, 0, 1, 1], [], []>} : vector<128x128xbf16>, vector<128x128xbf16>, vector<128x128xf32> -> vector<128x128xf32>
    %c0_43 = arith.constant 0 : index
    %c0_44 = arith.constant 0 : index
    %96 = vector.load %arg8[%c0_43, %c0_44] : memref<1x128xf32, #tpu.memory_space<vmem>>, vector<1x128xf32>
    %97 = vector.broadcast %96 : vector<1x128xf32> to vector<128x128xf32>
    %98 = arith.addf %95, %97 : vector<128x128xf32>
    %cst_45 = arith.constant dense<0xFF800000> : vector<128xf32>
    %99 = vector.multi_reduction <maximumf>, %98, %cst_45 [1] : vector<128x128xf32> to vector<128xf32>
    %100 = vector.shape_cast %99 : vector<128xf32> to vector<128x1xf32>
    %101 = vector.broadcast %100 : vector<128x1xf32> to vector<128x128xf32>
    %102 = arith.subf %98, %101 : vector<128x128xf32>
    %103 = math.exp %102 : vector<128x128xf32>
    %cst_46 = arith.constant dense<0.000000e+00> : vector<128xf32>
    %104 = vector.multi_reduction <add>, %103, %cst_46 [1] : vector<128x128xf32> to vector<128xf32>
    %105 = vector.shape_cast %104 : vector<128xf32> to vector<128x1xf32>
    %106 = math.log %105 : vector<128x1xf32>
    %107 = vector.broadcast %106 : vector<128x1xf32> to vector<128x128xf32>
    %108 = arith.subf %102, %107 : vector<128x128xf32>
    %c0_47 = arith.constant 0 : index
    %c0_48 = arith.constant 0 : index
    %109 = vector.load %arg9[%c0_47, %c0_48] : memref<128x128xf32, #tpu.memory_space<vmem>>, vector<128x128xf32>
    tpu.vector_store %arg9[%c0_47, %c0_48], %108 {strides = array<i32>} : memref<128x128xf32, #tpu.memory_space<vmem>>, vector<128x128xf32>,
    return
  }
}

</mosaic_0001>

<llo_original>
// kernel: tpu_custom_call.1
$region0: #{tpu_custom_call.1}
  #allocation0 [shape = 'u32[]', space=smem, size = 0x4, offset = 0x4, fixed_abs, tag = 'smem constant byte address 0x4 - core index']
  #allocation1 [shape = 'u32[144,128]{1,0:T(1,128)}', space=vmem, size = 0x12000, scoped, tag = 'internal scratch']
  %s0 = inlined_call_operand.hbm [shape: bf16[128,128], index: 0, kind: input, shape index: {}]
  %s1 = inlined_call_operand.hbm [shape: bf16[128,128], index: 1, kind: input, shape index: {}]
  %s2 = inlined_call_operand.hbm [shape: bf16[128,128], index: 2, kind: input, shape index: {}]
  %s3 = inlined_call_operand.vmem [shape: f32[1,128], index: 3, kind: input, shape index: {}]
  %s4 = inlined_call_operand.hbm [shape: bf16[2,128,128], index: 4, kind: input, shape index: {}]
  %s5 = inlined_call_operand.vmem [shape: f32[1,128], index: 5, kind: input, shape index: {}]
  %s6 = inlined_call_operand.vmem [shape: f32[1,128], index: 6, kind: input, shape index: {}]
  %s7 = inlined_call_operand.hbm [shape: bf16[128,128], index: 7, kind: input, shape index: {}]
  %s8 = inlined_call_operand.vmem [shape: f32[1,128], index: 8, kind: input, shape index: {}]
  %s9 = inlined_call_operand.hbm [shape: f32[128,128], index: 9, kind: output, shape index: {}]
  %s10 = sld [smem:[#allocation0]]
  $region66: #{tpu_custom_call.1} parent=0
    _
  %s12 = ssub.s32 1, %s10
  %s13 = scalar_select 0, %s12, %s10
  $region1: #{tpu_custom_call.1} parent=0
    #allocation2 [shape = 'u8[32768]{0}', space=vmem, size = 0x8000, scoped, tag = 'input window, operand 0, single buffered']
    #allocation3 [shape = 's32[1]{0}', space=sflag, size = 0x4, scoped, tag = 'scoped memory for tpu_custom_call.1']
    #allocation4 [shape = 's32[1]{0}', space=sflag, size = 0x4, scoped, tag = 'scoped memory for tpu_custom_call.1']
    #allocation5 [shape = 'u8[32768]{0}', space=vmem, size = 0x8000, scoped, tag = 'input window, operand 1, single buffered']
    #allocation6 [shape = 's32[1]{0}', space=sflag, size = 0x4, scoped, tag = 'scoped memory for tpu_custom_call.1']
    #allocation7 [shape = 'u8[32768]{0}', space=vmem, size = 0x8000, scoped, tag = 'input window, operand 2, single buffered']
    #allocation8 [shape = 'u8[65536]{0}', space=vmem, size = 0x10000, scoped, tag = 'input window, operand 4, single buffered']
    #allocation9 [shape = 's32[1]{0}', space=sflag, size = 0x4, scoped, tag = 'scoped memory for tpu_custom_call.1']
    #allocation10 [shape = 'u8[32768]{0}', space=vmem, size = 0x8000, scoped, tag = 'input window, operand 7, single buffered']
    #allocation11 [shape = 'u8[65536]{0}', space=vmem, size = 0x10000, scoped, tag = 'output window, operand 0, single buffered']
    %14 = vsyncpa [#allocation3], 0
    %15 = vsyncpa [#allocation6], 0
    %16 = vsyncpa [#allocation9], 0
    %17 = vsyncpa [#allocation4], 0
    // Predicated region
    $region2: #{tpu_custom_call.1} parent=1 // pred_check
      _
    $region3: #{tpu_custom_call.1} parent=1 // pred_check_branch
      %19 = sbr.rel (0) target = $region5
    $region4: #{tpu_custom_call.1} parent=1 // pred_region
      %s21 = ssub.s32 1024, 1024
      %22 = vsyncadd [#allocation3], %s21
      %s23 = sshll.u32 [#allocation2], 4
      %s24 = int_to_ptr.vmem [resolvable:$true] %s23
      %29 = dma.hbm_to_vmem [thread:$0]  %s0, 1024, %s24, [#allocation3], 64, 64, 4
    $region5: #{tpu_custom_call.1} parent=1 // pred_fallthru
      _
    // Predicated region
    $region6: #{tpu_custom_call.1} parent=1 // pred_check
      _
    $region7: #{tpu_custom_call.1} parent=1 // pred_check_branch
      %31 = sbr.rel (0) target = $region9
    $region8: #{tpu_custom_call.1} parent=1 // pred_region
      %s33 = ssub.s32 1024, 1024
      %34 = vsyncadd [#allocation6], %s33
      %s35 = sshll.u32 [#allocation5], 4
      %s36 = int_to_ptr.vmem [resolvable:$true] %s35
      %41 = dma.hbm_to_vmem [thread:$0]  %s1, 1024, %s36, [#allocation6], 64, 64, 4
    $region9: #{tpu_custom_call.1} parent=1 // pred_fallthru
      _
    // Predicated region
    $region10: #{tpu_custom_call.1} parent=1 // pred_check
      _
    $region11: #{tpu_custom_call.1} parent=1 // pred_check_branch
      %43 = sbr.rel (0) target = $region13
    $region12: #{tpu_custom_call.1} parent=1 // pred_region
      %s45 = ssub.s32 1024, 1024
      %46 = vsyncadd [#allocation6], %s45
      %s47 = sshll.u32 [#allocation7], 4
      %s48 = int_to_ptr.vmem [resolvable:$true] %s47
      %53 = dma.hbm_to_vmem [thread:$0]  %s2, 1024, %s48, [#allocation6], 64, 64, 4
    $region13: #{tpu_custom_call.1} parent=1 // pred_fallthru
      _
    // Predicated region
    $region14: #{tpu_custom_call.1} parent=1 // pred_check
      _
    $region15: #{tpu_custom_call.1} parent=1 // pred_check_branch
      %55 = sbr.rel (0) target = $region17
    $region16: #{tpu_custom_call.1} parent=1 // pred_region
      _
    $region17: #{tpu_custom_call.1} parent=1 // pred_fallthru
      _
    // Predicated region
    $region18: #{tpu_custom_call.1} parent=1 // pred_check
      _
    $region19: #{tpu_custom_call.1} parent=1 // pred_check_branch
      %57 = sbr.rel (0) target = $region21
    $region20: #{tpu_custom_call.1} parent=1 // pred_region
      %s59 = ssub.s32 2048, 2048
      %60 = vsyncadd [#allocation9], %s59
      %s61 = sshll.u32 [#allocation8], 4
      %s62 = int_to_ptr.vmem [resolvable:$true] %s61
      %67 = dma.hbm_to_vmem [thread:$0]  %s4, 2048, %s62, [#allocation9], 64, 64, 4
    $region21: #{tpu_custom_call.1} parent=1 // pred_fallthru
      _
    // Predicated region
    $region22: #{tpu_custom_call.1} parent=1 // pred_check
      _
    $region23: #{tpu_custom_call.1} parent=1 // pred_check_branch
      %69 = sbr.rel (0) target = $region25
    $region24: #{tpu_custom_call.1} parent=1 // pred_region
      _
    $region25: #{tpu_custom_call.1} parent=1 // pred_fallthru
      _
    // Predicated region
    $region26: #{tpu_custom_call.1} parent=1 // pred_check
      _
    $region27: #{tpu_custom_call.1} parent=1 // pred_check_branch
      %71 = sbr.rel (0) target = $region29
    $region28: #{tpu_custom_call.1} parent=1 // pred_region
      _
    $region29: #{tpu_custom_call.1} parent=1 // pred_fallthru
      _
    // Predicated region
    $region30: #{tpu_custom_call.1} parent=1 // pred_check
      _
    $region31: #{tpu_custom_call.1} parent=1 // pred_check_branch
      %73 = sbr.rel (0) target = $region33
    $region32: #{tpu_custom_call.1} parent=1 // pred_region
      %s75 = ssub.s32 1024, 1024
      %76 = vsyncadd [#allocation9], %s75
      %s77 = sshll.u32 [#allocation10], 4
      %s78 = int_to_ptr.vmem [resolvable:$true] %s77
      %83 = dma.hbm_to_vmem [thread:$0]  %s7, 1024, %s78, [#allocation9], 64, 64, 4
    $region33: #{tpu_custom_call.1} parent=1 // pred_fallthru
      _
    // Predicated region
    $region34: #{tpu_custom_call.1} parent=1 // pred_check
      _
    $region35: #{tpu_custom_call.1} parent=1 // pred_check_branch
      %85 = sbr.rel (0) target = $region37
    $region36: #{tpu_custom_call.1} parent=1 // pred_region
      _
    $region37: #{tpu_custom_call.1} parent=1 // pred_fallthru
      _
    // Predicated region
    $region38: #{tpu_custom_call.1} parent=1 // pred_check
      _
    $region39: #{tpu_custom_call.1} parent=1 // pred_check_branch
      %87 = sbr.rel (0) target = $region41
    $region40: #{tpu_custom_call.1} parent=1 // pred_region
      %88 = dma.done [#allocation3], 1024
    $region41: #{tpu_custom_call.1} parent=1 // pred_fallthru
      _
    // Predicated region
    $region42: #{tpu_custom_call.1} parent=1 // pred_check
      _
    $region43: #{tpu_custom_call.1} parent=1 // pred_check_branch
      %90 = sbr.rel (0) target = $region45
    $region44: #{tpu_custom_call.1} parent=1 // pred_region
      %91 = dma.done [#allocation6], 1024
    $region45: #{tpu_custom_call.1} parent=1 // pred_fallthru
      _
    // Predicated region
    $region46: #{tpu_custom_call.1} parent=1 // pred_check
      _
    $region47: #{tpu_custom_call.1} parent=1 // pred_check_branch
      %93 = sbr.rel (0) target = $region49
    $region48: #{tpu_custom_call.1} parent=1 // pred_region
      %94 = dma.done [#allocation6], 1024
    $region49: #{tpu_custom_call.1} parent=1 // pred_fallthru
      _
    // Predicated region
    $region50: #{tpu_custom_call.1} parent=1 // pred_check
      _
    $region51: #{tpu_custom_call.1} parent=1 // pred_check_branch
      %96 = sbr.rel (0) target = $region53
    $region52: #{tpu_custom_call.1} parent=1 // pred_region
      %97 = dma.done [#allocation9], 2048
    $region53: #{tpu_custom_call.1} parent=1 // pred_fallthru
      _
    // Predicated region
    $region54: #{tpu_custom_call.1} parent=1 // pred_check
      _
    $region55: #{tpu_custom_call.1} parent=1 // pred_check_branch
      %99 = sbr.rel (0) target = $region57
    $region56: #{tpu_custom_call.1} parent=1 // pred_region
      %100 = dma.done [#allocation9], 1024
    $region57: #{tpu_custom_call.1} parent=1 // pred_fallthru
      _
    %v102 = vld [vmem:[#allocation2] sm:$0xf]
    %v103 = vld [vmem:[#allocation2 + $0x4] sm:$0xf]
    %v104 = vld [vmem:[#allocation2 + $0x8] sm:$0xf]
    %v105 = vld [vmem:[#allocation2 + $0xc] sm:$0xf]
    %v106 = vld [vmem:[#allocation2 + $0x10] sm:$0xf]
    %v107 = vld [vmem:[#allocation2 + $0x14] sm:$0xf]
    %v108 = vld [vmem:[#allocation2 + $0x18] sm:$0xf]
    %v109 = vld [vmem:[#allocation2 + $0x1c] sm:$0xf]
    %v110 = vld [vmem:[#allocation2 + $0x20] sm:$0xf]
    %v111 = vld [vmem:[#allocation2 + $0x24] sm:$0xf]
    %v112 = vld [vmem:[#allocation2 + $0x28] sm:$0xf]
    %v113 = vld [vmem:[#allocation2 + $0x2c] sm:$0xf]
    %v114 = vld [vmem:[#allocation2 + $0x30] sm:$0xf]
    %v115 = vld [vmem:[#allocation2 + $0x34] sm:$0xf]
    %v116 = vld [vmem:[#allocation2 + $0x38] sm:$0xf]
    %v117 = vld [vmem:[#allocation2 + $0x3c] sm:$0xf]
    %v118 = vld [vmem:[#allocation7] sm:$0xf]
    %v119 = vld [vmem:[#allocation7 + $0x4] sm:$0xf]
    %v120 = vld [vmem:[#allocation7 + $0x8] sm:$0xf]
    %v121 = vld [vmem:[#allocation7 + $0xc] sm:$0xf]
    %v122 = vld [vmem:[#allocation7 + $0x10] sm:$0xf]
    %v123 = vld [vmem:[#allocation7 + $0x14] sm:$0xf]
    %v124 = vld [vmem:[#allocation7 + $0x18] sm:$0xf]
    %v125 = vld [vmem:[#allocation7 + $0x1c] sm:$0xf]
    %v126 = vld [vmem:[#allocation7 + $0x20] sm:$0xf]
    %v127 = vld [vmem:[#allocation7 + $0x24] sm:$0xf]
    %v128 = vld [vmem:[#allocation7 + $0x28] sm:$0xf]
    %v129 = vld [vmem:[#allocation7 + $0x2c] sm:$0xf]
    %v130 = vld [vmem:[#allocation7 + $0x30] sm:$0xf]
    %v131 = vld [vmem:[#allocation7 + $0x34] sm:$0xf]
    %v132 = vld [vmem:[#allocation7 + $0x38] sm:$0xf]
    %v133 = vld [vmem:[#allocation7 + $0x3c] sm:$0xf]
    %v134 = vld [vmem:[%s3] sm:$0x1]
    %v136 = vlaneseq
    %v137 = vshrl.u32 %v136, 7
    %v138 = vsub.s32 0, %v137
    %v139 = vrot.slane %v134, %v138
    %v157 = vunpack.c.l.b16 %v102
    %v158 = vunpack.c.l.b16 %v103
    %v159 = vunpack.c.l.b16 %v104
    %v160 = vunpack.c.l.b16 %v105
    %v161 = vunpack.c.l.b16 %v106
    %v162 = vunpack.c.l.b16 %v107
    %v163 = vunpack.c.l.b16 %v108
    %v164 = vunpack.c.l.b16 %v109
    %v165 = vunpack.c.l.b16 %v110
    %v166 = vunpack.c.l.b16 %v111
    %v167 = vunpack.c.l.b16 %v112
    %v168 = vunpack.c.l.b16 %v113
    %v169 = vunpack.c.l.b16 %v114
    %v170 = vunpack.c.l.b16 %v115
    %v171 = vunpack.c.l.b16 %v116
    %v172 = vunpack.c.l.b16 %v117
    %v173 = vpack.c.b16 %v158, %v157
    %v174 = vpack.c.b16 %v160, %v159
    %v175 = vpack.c.b16 %v162, %v161
    %v176 = vpack.c.b16 %v164, %v163
    %v177 = vpack.c.b16 %v166, %v165
    %v178 = vpack.c.b16 %v168, %v167
    %v179 = vpack.c.b16 %v170, %v169
    %v180 = vpack.c.b16 %v172, %v171
    %v205 = vunpack.c.l.b16 %v118
    %v206 = vunpack.c.l.b16 %v119
    %v207 = vunpack.c.l.b16 %v120
    %v208 = vunpack.c.l.b16 %v121
    %v209 = vunpack.c.l.b16 %v122
    %v210 = vunpack.c.l.b16 %v123
    %v211 = vunpack.c.l.b16 %v124
    %v212 = vunpack.c.l.b16 %v125
    %v213 = vunpack.c.l.b16 %v126
    %v214 = vunpack.c.l.b16 %v127
    %v215 = vunpack.c.l.b16 %v128
    %v216 = vunpack.c.l.b16 %v129
    %v217 = vunpack.c.l.b16 %v130
    %v218 = vunpack.c.l.b16 %v131
    %v219 = vunpack.c.l.b16 %v132
    %v220 = vunpack.c.l.b16 %v133
    %v221 = vpack.c.b16 %v206, %v205
    %v222 = vpack.c.b16 %v208, %v207
    %v223 = vpack.c.b16 %v210, %v209
    %v224 = vpack.c.b16 %v212, %v211
    %v225 = vpack.c.b16 %v214, %v213
    %v226 = vpack.c.b16 %v216, %v215
    %v227 = vpack.c.b16 %v218, %v217
    %v228 = vpack.c.b16 %v220, %v219
    %237 = vmatprep.subr.bf16.mxu0 0
    %238 = vmatpush1.bf16.msra.mxu0 %v221
    %239 = vmatprep.subr.bf16.mxu0 0
    %240 = vmatpush1.bf16.msra.mxu0 %v222
    %241 = vmatprep.subr.bf16.mxu0 0
    %242 = vmatpush1.bf16.msra.mxu0 %v223
    %243 = vmatprep.subr.bf16.mxu0 0
    %244 = vmatpush1.bf16.msra.mxu0 %v224
    %245 = vmatprep.subr.bf16.mxu0 0
    %246 = vmatpush1.bf16.msra.mxu0 %v225
    %247 = vmatprep.subr.bf16.mxu0 0
    %248 = vmatpush1.bf16.msra.mxu0 %v226
    %249 = vmatprep.subr.bf16.mxu0 0
    %250 = vmatpush1.bf16.msra.mxu0 %v227
    %251 = vmatprep.subr.bf16.mxu0 0
    %252 = vmatpush1.bf16.msra.mxu0 %v228
    %253 = vmatprep.subr.bf16.mxu0 0
    %254 = vmatpush1.bf16.msra.mxu0 0
    %255 = vmatprep.subr.bf16.mxu0 0
    %256 = vmatpush1.bf16.msra.mxu0 0
    %257 = vmatprep.subr.bf16.mxu0 0
    %258 = vmatpush1.bf16.msra.mxu0 0
    %259 = vmatprep.subr.bf16.mxu0 0
    %260 = vmatpush1.bf16.msra.mxu0 0
    %261 = vmatprep.subr.bf16.mxu0 0
    %262 = vmatpush1.bf16.msra.mxu0 0
    %263 = vmatprep.subr.bf16.mxu0 0
    %264 = vmatpush1.bf16.msra.mxu0 0
    %265 = vmatprep.subr.bf16.mxu0 0
    %266 = vmatpush1.bf16.msra.mxu0 0
    %267 = vmatprep.subr.bf16.mxu0 0
    %268 = vmatpush1.bf16.msra.mxu0 0
    %269 = vmatprep.mubr.bf16.mxu0 0
    %270 = vmatmul.mubr.bf16.gmra.mrb[0].mxu0 %v173
    %v271 = vpop.f32.mrb[0].mxu0
    %v272 = vadd.f32 %v139, %v271
    %v273 = vpop.f32.mrb[0].mxu0
    %v274 = vpop.f32.mrb[0].mxu0
    %v275 = vadd.f32 %v139, %v274
    %v276 = vpop.f32.mrb[0].mxu0
    %277 = vmatprep.mubr.bf16.mxu0 0
    %278 = vmatmul.mubr.bf16.gmra.mrb[0].mxu0 %v174
    %v279 = vpop.f32.mrb[0].mxu0
    %v280 = vadd.f32 %v139, %v279
    %v281 = vpop.f32.mrb[0].mxu0
    %v282 = vpop.f32.mrb[0].mxu0
    %v283 = vadd.f32 %v139, %v282
    %v284 = vpop.f32.mrb[0].mxu0
    %285 = vmatprep.mubr.bf16.mxu0 0
    %286 = vmatmul.mubr.bf16.gmra.mrb[0].mxu0 %v175
    %v287 = vpop.f32.mrb[0].mxu0
    %v288 = vadd.f32 %v139, %v287
    %v289 = vpop.f32.mrb[0].mxu0
    %v290 = vpop.f32.mrb[0].mxu0
    %v291 = vadd.f32 %v139, %v290
    %v292 = vpop.f32.mrb[0].mxu0
    %293 = vmatprep.mubr.bf16.mxu0 0
    %294 = vmatmul.mubr.bf16.gmra.mrb[0].mxu0 %v176
    %v295 = vpop.f32.mrb[0].mxu0
    %v296 = vadd.f32 %v139, %v295
    %v297 = vpop.f32.mrb[0].mxu0
    %v298 = vpop.f32.mrb[0].mxu0
    %v299 = vadd.f32 %v139, %v298
    %v300 = vpop.f32.mrb[0].mxu0
    %301 = vmatprep.mubr.bf16.mxu0 0
    %302 = vmatmul.mubr.bf16.gmra.mrb[0].mxu0 %v177
    %v303 = vpop.f32.mrb[0].mxu0
    %v304 = vadd.f32 %v139, %v303
    %v305 = vpop.f32.mrb[0].mxu0
    %v306 = vpop.f32.mrb[0].mxu0
    %v307 = vadd.f32 %v139, %v306
    %v308 = vpop.f32.mrb[0].mxu0
    %309 = vmatprep.mubr.bf16.mxu0 0
    %310 = vmatmul.mubr.bf16.gmra.mrb[0].mxu0 %v178
    %v311 = vpop.f32.mrb[0].mxu0
    %v312 = vadd.f32 %v139, %v311
    %v313 = vpop.f32.mrb[0].mxu0
    %v314 = vpop.f32.mrb[0].mxu0
    %v315 = vadd.f32 %v139, %v314
    %v316 = vpop.f32.mrb[0].mxu0
    %317 = vmatprep.mubr.bf16.mxu0 0
    %318 = vmatmul.mubr.bf16.gmra.mrb[0].mxu0 %v179
    %v319 = vpop.f32.mrb[0].mxu0
    %v320 = vadd.f32 %v139, %v319
    %v321 = vpop.f32.mrb[0].mxu0
    %v322 = vpop.f32.mrb[0].mxu0
    %v323 = vadd.f32 %v139, %v322
    %v324 = vpop.f32.mrb[0].mxu0
    %325 = vmatprep.mubr.bf16.mxu0 0
    %326 = vmatmul.mubr.bf16.gmra.mrb[0].mxu0 %v180
    %v327 = vpop.f32.mrb[0].mxu0
    %v328 = vadd.f32 %v139, %v327
    %v329 = vpop.f32.mrb[0].mxu0
    %v330 = vpop.f32.mrb[0].mxu0
    %v331 = vadd.f32 %v139, %v330
    %v332 = vpop.f32.mrb[0].mxu0
    %333 = vdwg.mxu0
    %v334 = vmul.f32 %v272, 0.5
    %v335 = vmul.f32 %v275, 0.5
    %v336 = vmul.f32 %v280, 0.5
    %v337 = vmul.f32 %v283, 0.5
    %v338 = vmul.f32 %v288, 0.5
    %v339 = vmul.f32 %v291, 0.5
    %v340 = vmul.f32 %v296, 0.5
    %v341 = vmul.f32 %v299, 0.5
    %v342 = vmul.f32 %v304, 0.5
    %v343 = vmul.f32 %v307, 0.5
    %v344 = vmul.f32 %v312, 0.5
    %v345 = vmul.f32 %v315, 0.5
    %v346 = vmul.f32 %v320, 0.5
    %v347 = vmul.f32 %v323, 0.5
    %v348 = vmul.f32 %v328, 0.5
    %v349 = vmul.f32 %v331, 0.5
    %v350 = vtanh.pop %v334
    %v351 = vtanh.pop %v335
    %v352 = vtanh.pop %v336
    %v353 = vtanh.pop %v337
    %v354 = vtanh.pop %v338
    %v355 = vtanh.pop %v339
    %v356 = vtanh.pop %v340
    %v357 = vtanh.pop %v341
    %v358 = vtanh.pop %v342
    %v359 = vtanh.pop %v343
    %v360 = vtanh.pop %v344
    %v361 = vtanh.pop %v345
    %v362 = vtanh.pop %v346
    %v363 = vtanh.pop %v347
    %v364 = vtanh.pop %v348
    %v365 = vtanh.pop %v349
    %v366 = vadd.f32 %v350, 1.0
    %v367 = vadd.f32 %v351, 1.0
    %v368 = vadd.f32 %v352, 1.0
    %v369 = vadd.f32 %v353, 1.0
    %v370 = vadd.f32 %v354, 1.0
    %v371 = vadd.f32 %v355, 1.0
    %v372 = vadd.f32 %v356, 1.0
    %v373 = vadd.f32 %v357, 1.0
    %v374 = vadd.f32 %v358, 1.0
    %v375 = vadd.f32 %v359, 1.0
    %v376 = vadd.f32 %v360, 1.0
    %v377 = vadd.f32 %v361, 1.0
    %v378 = vadd.f32 %v362, 1.0
    %v379 = vadd.f32 %v363, 1.0
    %v380 = vadd.f32 %v364, 1.0
    %v381 = vadd.f32 %v365, 1.0
    %v382 = vmul.f32 %v366, 0.5
    %v383 = vmul.f32 %v367, 0.5
    %v384 = vmul.f32 %v368, 0.5
    %v385 = vmul.f32 %v369, 0.5
    %v386 = vmul.f32 %v370, 0.5
    %v387 = vmul.f32 %v371, 0.5
    %v388 = vmul.f32 %v372, 0.5
    %v389 = vmul.f32 %v373, 0.5
    %v390 = vmul.f32 %v374, 0.5
    %v391 = vmul.f32 %v375, 0.5
    %v392 = vmul.f32 %v376, 0.5
    %v393 = vmul.f32 %v377, 0.5
    %v394 = vmul.f32 %v378, 0.5
    %v395 = vmul.f32 %v379, 0.5
    %v396 = vmul.f32 %v380, 0.5
    %v397 = vmul.f32 %v381, 0.5
    %v398 = vmul.f32 %v272, %v382
    %v399 = vmul.f32 %v275, %v383
    %v400 = vmul.f32 %v280, %v384
    %v401 = vmul.f32 %v283, %v385
    %v402 = vmul.f32 %v288, %v386
    %v403 = vmul.f32 %v291, %v387
    %v404 = vmul.f32 %v296, %v388
    %v405 = vmul.f32 %v299, %v389
    %v406 = vmul.f32 %v304, %v390
    %v407 = vmul.f32 %v307, %v391
    %v408 = vmul.f32 %v312, %v392
    %v409 = vmul.f32 %v315, %v393
    %v410 = vmul.f32 %v320, %v394
    %v411 = vmul.f32 %v323, %v395
    %v412 = vmul.f32 %v328, %v396
    %v413 = vmul.f32 %v331, %v397
    %v414 = vmul.f32 %v398, 0.1
    %v415 = vmul.f32 %v399, 0.1
    %v416 = vmul.f32 %v400, 0.1
    %v417 = vmul.f32 %v401, 0.1
    %v418 = vmul.f32 %v402, 0.1
    %v419 = vmul.f32 %v403, 0.1
    %v420 = vmul.f32 %v404, 0.1
    %v421 = vmul.f32 %v405, 0.1
    %v422 = vmul.f32 %v406, 0.1
    %v423 = vmul.f32 %v407, 0.1
    %v424 = vmul.f32 %v408, 0.1
    %v425 = vmul.f32 %v409, 0.1
    %v426 = vmul.f32 %v410, 0.1
    %v427 = vmul.f32 %v411, 0.1
    %v428 = vmul.f32 %v412, 0.1
    %v429 = vmul.f32 %v413, 0.1
    %v430 = vld [vmem:[#allocation5] sm:$0xf]
    %v431 = vld [vmem:[#allocation5 + $0x4] sm:$0xf]
    %v432 = vld [vmem:[#allocation5 + $0x8] sm:$0xf]
    %v433 = vld [vmem:[#allocation5 + $0xc] sm:$0xf]
    %v434 = vld [vmem:[#allocation5 + $0x10] sm:$0xf]
    %v435 = vld [vmem:[#allocation5 + $0x14] sm:$0xf]
    %v436 = vld [vmem:[#allocation5 + $0x18] sm:$0xf]
    %v437 = vld [vmem:[#allocation5 + $0x1c] sm:$0xf]
    %v438 = vld [vmem:[#allocation5 + $0x20] sm:$0xf]
    %v439 = vld [vmem:[#allocation5 + $0x24] sm:$0xf]
    %v440 = vld [vmem:[#allocation5 + $0x28] sm:$0xf]
    %v441 = vld [vmem:[#allocation5 + $0x2c] sm:$0xf]
    %v442 = vld [vmem:[#allocation5 + $0x30] sm:$0xf]
    %v443 = vld [vmem:[#allocation5 + $0x34] sm:$0xf]
    %v444 = vld [vmem:[#allocation5 + $0x38] sm:$0xf]
    %v445 = vld [vmem:[#allocation5 + $0x3c] sm:$0xf]
    %v446 = vld [vmem:[%s5] sm:$0x1]
    %v447 = vld [vmem:[%s6] sm:$0x1]
    %v448 = vpack.c.bf16 %v399, %v398
    %v449 = vpack.c.bf16 %v401, %v400
    %v450 = vpack.c.bf16 %v403, %v402
    %v451 = vpack.c.bf16 %v405, %v404
    %v452 = vpack.c.bf16 %v407, %v406
    %v453 = vpack.c.bf16 %v409, %v408
    %v454 = vpack.c.bf16 %v411, %v410
    %v455 = vpack.c.bf16 %v413, %v412
    %v472 = vunpack.c.l.b16 %v430
    %v473 = vunpack.c.l.b16 %v431
    %v474 = vunpack.c.l.b16 %v432
    %v475 = vunpack.c.l.b16 %v433
    %v476 = vunpack.c.l.b16 %v434
    %v477 = vunpack.c.l.b16 %v435
    %v478 = vunpack.c.l.b16 %v436
    %v479 = vunpack.c.l.b16 %v437
    %v480 = vunpack.c.l.b16 %v438
    %v481 = vunpack.c.l.b16 %v439
    %v482 = vunpack.c.l.b16 %v440
    %v483 = vunpack.c.l.b16 %v441
    %v484 = vunpack.c.l.b16 %v442
    %v485 = vunpack.c.l.b16 %v443
    %v486 = vunpack.c.l.b16 %v444
    %v487 = vunpack.c.l.b16 %v445
    %v488 = vpack.c.b16 %v473, %v472
    %v489 = vpack.c.b16 %v475, %v474
    %v490 = vpack.c.b16 %v477, %v476
    %v491 = vpack.c.b16 %v479, %v478
    %v492 = vpack.c.b16 %v481, %v480
    %v493 = vpack.c.b16 %v483, %v482
    %v494 = vpack.c.b16 %v485, %v484
    %v495 = vpack.c.b16 %v487, %v486
    %504 = vmatprep.subr.bf16.mxu0 0
    %505 = vmatpush1.bf16.msra.mxu0 %v448
    %506 = vmatprep.subr.bf16.mxu0 0
    %507 = vmatpush1.bf16.msra.mxu0 %v449
    %508 = vmatprep.subr.bf16.mxu0 0
    %509 = vmatpush1.bf16.msra.mxu0 %v450
    %510 = vmatprep.subr.bf16.mxu0 0
    %511 = vmatpush1.bf16.msra.mxu0 %v451
    %512 = vmatprep.subr.bf16.mxu0 0
    %513 = vmatpush1.bf16.msra.mxu0 %v452
    %514 = vmatprep.subr.bf16.mxu0 0
    %515 = vmatpush1.bf16.msra.mxu0 %v453
    %516 = vmatprep.subr.bf16.mxu0 0
    %517 = vmatpush1.bf16.msra.mxu0 %v454
    %518 = vmatprep.subr.bf16.mxu0 0
    %519 = vmatpush1.bf16.msra.mxu0 %v455
    %520 = vmatprep.subr.bf16.mxu0 0
    %521 = vmatpush1.bf16.msra.mxu0 0
    %522 = vmatprep.subr.bf16.mxu0 0
    %523 = vmatpush1.bf16.msra.mxu0 0
    %524 = vmatprep.subr.bf16.mxu0 0
    %525 = vmatpush1.bf16.msra.mxu0 0
    %526 = vmatprep.subr.bf16.mxu0 0
    %527 = vmatpush1.bf16.msra.mxu0 0
    %528 = vmatprep.subr.bf16.mxu0 0
    %529 = vmatpush1.bf16.msra.mxu0 0
    %530 = vmatprep.subr.bf16.mxu0 0
    %531 = vmatpush1.bf16.msra.mxu0 0
    %532 = vmatprep.subr.bf16.mxu0 0
    %533 = vmatpush1.bf16.msra.mxu0 0
    %534 = vmatprep.subr.bf16.mxu0 0
    %535 = vmatpush1.bf16.msra.mxu0 0
    %536 = vmatprep.mubr.bf16.mxu0 0
    %537 = vmatmul.mubr.bf16.gmra.mrb[0].mxu0 %v488
    %v538 = vpop.f32.mrb[0].mxu0
    %v539 = vadd.f32 0.0, %v538
    %v540 = vpop.f32.mrb[0].mxu0
    %v541 = vpop.f32.mrb[0].mxu0
    %v542 = vadd.f32 0.0, %v541
    %v543 = vpop.f32.mrb[0].mxu0
    %544 = vmatprep.mubr.bf16.mxu0 0
    %545 = vmatmul.mubr.bf16.gmra.mrb[0].mxu0 %v489
    %v546 = vpop.f32.mrb[0].mxu0
    %v547 = vadd.f32 0.0, %v546
    %v548 = vpop.f32.mrb[0].mxu0
    %v549 = vpop.f32.mrb[0].mxu0
    %v550 = vadd.f32 0.0, %v549
    %v551 = vpop.f32.mrb[0].mxu0
    %552 = vmatprep.mubr.bf16.mxu0 0
    %553 = vmatmul.mubr.bf16.gmra.mrb[0].mxu0 %v490
    %v554 = vpop.f32.mrb[0].mxu0
    %v555 = vadd.f32 0.0, %v554
    %v556 = vpop.f32.mrb[0].mxu0
    %v557 = vpop.f32.mrb[0].mxu0
    %v558 = vadd.f32 0.0, %v557
    %v559 = vpop.f32.mrb[0].mxu0
    %560 = vmatprep.mubr.bf16.mxu0 0
    %561 = vmatmul.mubr.bf16.gmra.mrb[0].mxu0 %v491
    %v562 = vpop.f32.mrb[0].mxu0
    %v563 = vadd.f32 0.0, %v562
    %v564 = vpop.f32.mrb[0].mxu0
    %v565 = vpop.f32.mrb[0].mxu0
    %v566 = vadd.f32 0.0, %v565
    %v567 = vpop.f32.mrb[0].mxu0
    %568 = vmatprep.mubr.bf16.mxu0 0
    %569 = vmatmul.mubr.bf16.gmra.mrb[0].mxu0 %v492
    %v570 = vpop.f32.mrb[0].mxu0
    %v571 = vadd.f32 0.0, %v570
    %v572 = vpop.f32.mrb[0].mxu0
    %v573 = vpop.f32.mrb[0].mxu0
    %v574 = vadd.f32 0.0, %v573
    %v575 = vpop.f32.mrb[0].mxu0
    %576 = vmatprep.mubr.bf16.mxu0 0
    %577 = vmatmul.mubr.bf16.gmra.mrb[0].mxu0 %v493
    %v578 = vpop.f32.mrb[0].mxu0
    %v579 = vadd.f32 0.0, %v578
    %v580 = vpop.f32.mrb[0].mxu0
    %v581 = vpop.f32.mrb[0].mxu0
    %v582 = vadd.f32 0.0, %v581
    %v583 = vpop.f32.mrb[0].mxu0
    %584 = vmatprep.mubr.bf16.mxu0 0
    %585 = vmatmul.mubr.bf16.gmra.mrb[0].mxu0 %v494
    %v586 = vpop.f32.mrb[0].mxu0
    %v587 = vadd.f32 0.0, %v586
    %v588 = vpop.f32.mrb[0].mxu0
    %v589 = vpop.f32.mrb[0].mxu0
    %v590 = vadd.f32 0.0, %v589
    %v591 = vpop.f32.mrb[0].mxu0
    %592 = vmatprep.mubr.bf16.mxu0 0
    %593 = vmatmul.mubr.bf16.gmra.mrb[0].mxu0 %v495
    %v594 = vpop.f32.mrb[0].mxu0
    %v595 = vadd.f32 0.0, %v594
    %v596 = vpop.f32.mrb[0].mxu0
    %v597 = vpop.f32.mrb[0].mxu0
    %v598 = vadd.f32 0.0, %v597
    %v599 = vpop.f32.mrb[0].mxu0
    %600 = vdwg.mxu0
    %601 = vadd.xlane.f32.xlu0 %v539
    %v602 = vpop.xlane.xlu0 %601
    %603 = vadd.xlane.f32.xlu0 %v542
    %v604 = vpop.xlane.xlu0 %603
    %605 = vadd.xlane.f32.xlu0 %v547
    %v606 = vpop.xlane.xlu0 %605
    %607 = vadd.xlane.f32.xlu0 %v550
    %v608 = vpop.xlane.xlu0 %607
    %609 = vadd.xlane.f32.xlu0 %v555
    %v610 = vpop.xlane.xlu0 %609
    %611 = vadd.xlane.f32.xlu0 %v558
    %v612 = vpop.xlane.xlu0 %611
    %613 = vadd.xlane.f32.xlu0 %v563
    %v614 = vpop.xlane.xlu0 %613
    %615 = vadd.xlane.f32.xlu0 %v566
    %v616 = vpop.xlane.xlu0 %615
    %617 = vadd.xlane.f32.xlu0 %v571
    %v618 = vpop.xlane.xlu0 %617
    %619 = vadd.xlane.f32.xlu0 %v574
    %v620 = vpop.xlane.xlu0 %619
    %621 = vadd.xlane.f32.xlu0 %v579
    %v622 = vpop.xlane.xlu0 %621
    %623 = vadd.xlane.f32.xlu0 %v582
    %v624 = vpop.xlane.xlu0 %623
    %625 = vadd.xlane.f32.xlu0 %v587
    %v626 = vpop.xlane.xlu0 %625
    %627 = vadd.xlane.f32.xlu0 %v590
    %v628 = vpop.xlane.xlu0 %627
    %629 = vadd.xlane.f32.xlu0 %v595
    %v630 = vpop.xlane.xlu0 %629
    %631 = vadd.xlane.f32.xlu0 %v598
    %v632 = vpop.xlane.xlu0 %631
    %v633 = vmul.f32 %v602, 0.03125
    %v634 = vmul.f32 %v604, 0.03125
    %v635 = vmul.f32 %v606, 0.03125
    %v636 = vmul.f32 %v608, 0.03125
    %v637 = vmul.f32 %v610, 0.03125
    %v638 = vmul.f32 %v612, 0.03125
    %v639 = vmul.f32 %v614, 0.03125
    %v640 = vmul.f32 %v616, 0.03125
    %v641 = vmul.f32 %v618, 0.03125
    %v642 = vmul.f32 %v620, 0.03125
    %v643 = vmul.f32 %v622, 0.03125
    %v644 = vmul.f32 %v624, 0.03125
    %v645 = vmul.f32 %v626, 0.03125
    %v646 = vmul.f32 %v628, 0.03125
    %v647 = vmul.f32 %v630, 0.03125
    %v648 = vmul.f32 %v632, 0.03125
    %v649 = vmul.f32 %v539, %v539
    %v650 = vmul.f32 %v542, %v542
    %v651 = vmul.f32 %v547, %v547
    %v652 = vmul.f32 %v550, %v550
    %v653 = vmul.f32 %v555, %v555
    %v654 = vmul.f32 %v558, %v558
    %v655 = vmul.f32 %v563, %v563
    %v656 = vmul.f32 %v566, %v566
    %v657 = vmul.f32 %v571, %v571
    %v658 = vmul.f32 %v574, %v574
    %v659 = vmul.f32 %v579, %v579
    %v660 = vmul.f32 %v582, %v582
    %v661 = vmul.f32 %v587, %v587
    %v662 = vmul.f32 %v590, %v590
    %v663 = vmul.f32 %v595, %v595
    %v664 = vmul.f32 %v598, %v598
    %665 = vadd.xlane.f32.xlu0 %v649
    %v666 = vpop.xlane.xlu0 %665
    %667 = vadd.xlane.f32.xlu0 %v650
    %v668 = vpop.xlane.xlu0 %667
    %669 = vadd.xlane.f32.xlu0 %v651
    %v670 = vpop.xlane.xlu0 %669
    %671 = vadd.xlane.f32.xlu0 %v652
    %v672 = vpop.xlane.xlu0 %671
    %673 = vadd.xlane.f32.xlu0 %v653
    %v674 = vpop.xlane.xlu0 %673
    %675 = vadd.xlane.f32.xlu0 %v654
    %v676 = vpop.xlane.xlu0 %675
    %677 = vadd.xlane.f32.xlu0 %v655
    %v678 = vpop.xlane.xlu0 %677
    %679 = vadd.xlane.f32.xlu0 %v656
    %v680 = vpop.xlane.xlu0 %679
    %681 = vadd.xlane.f32.xlu0 %v657
    %v682 = vpop.xlane.xlu0 %681
    %683 = vadd.xlane.f32.xlu0 %v658
    %v684 = vpop.xlane.xlu0 %683
    %685 = vadd.xlane.f32.xlu0 %v659
    %v686 = vpop.xlane.xlu0 %685
    %687 = vadd.xlane.f32.xlu0 %v660
    %v688 = vpop.xlane.xlu0 %687
    %689 = vadd.xlane.f32.xlu0 %v661
    %v690 = vpop.xlane.xlu0 %689
    %691 = vadd.xlane.f32.xlu0 %v662
    %v692 = vpop.xlane.xlu0 %691
    %693 = vadd.xlane.f32.xlu0 %v663
    %v694 = vpop.xlane.xlu0 %693
    %695 = vadd.xlane.f32.xlu0 %v664
    %v696 = vpop.xlane.xlu0 %695
    %v697 = vmul.f32 %v666, 0.03125
    %v698 = vmul.f32 %v668, 0.03125
    %v699 = vmul.f32 %v670, 0.03125
    %v700 = vmul.f32 %v672, 0.03125
    %v701 = vmul.f32 %v674, 0.03125
    %v702 = vmul.f32 %v676, 0.03125
    %v703 = vmul.f32 %v678, 0.03125
    %v704 = vmul.f32 %v680, 0.03125
    %v705 = vmul.f32 %v682, 0.03125
    %v706 = vmul.f32 %v684, 0.03125
    %v707 = vmul.f32 %v686, 0.03125
    %v708 = vmul.f32 %v688, 0.03125
    %v709 = vmul.f32 %v690, 0.03125
    %v710 = vmul.f32 %v692, 0.03125
    %v711 = vmul.f32 %v694, 0.03125
    %v712 = vmul.f32 %v696, 0.03125
    %v713 = vmul.f32 %v633, %v633
    %v714 = vmul.f32 %v634, %v634
    %v715 = vmul.f32 %v635, %v635
    %v716 = vmul.f32 %v636, %v636
    %v717 = vmul.f32 %v637, %v637
    %v718 = vmul.f32 %v638, %v638
    %v719 = vmul.f32 %v639, %v639
    %v720 = vmul.f32 %v640, %v640
    %v721 = vmul.f32 %v641, %v641
    %v722 = vmul.f32 %v642, %v642
    %v723 = vmul.f32 %v643, %v643
    %v724 = vmul.f32 %v644, %v644
    %v725 = vmul.f32 %v645, %v645
    %v726 = vmul.f32 %v646, %v646
    %v727 = vmul.f32 %v647, %v647
    %v728 = vmul.f32 %v648, %v648
    %v729 = vsub.f32 %v697, %v713
    %v730 = vsub.f32 %v698, %v714
    %v731 = vsub.f32 %v699, %v715
    %v732 = vsub.f32 %v700, %v716
    %v733 = vsub.f32 %v701, %v717
    %v734 = vsub.f32 %v702, %v718
    %v735 = vsub.f32 %v703, %v719
    %v736 = vsub.f32 %v704, %v720
    %v737 = vsub.f32 %v705, %v721
    %v738 = vsub.f32 %v706, %v722
    %v739 = vsub.f32 %v707, %v723
    %v740 = vsub.f32 %v708, %v724
    %v741 = vsub.f32 %v709, %v725
    %v742 = vsub.f32 %v710, %v726
    %v743 = vsub.f32 %v711, %v727
    %v744 = vsub.f32 %v712, %v728
    %v745 = vsub.f32 %v539, %v633
    %v746 = vsub.f32 %v542, %v634
    %v747 = vsub.f32 %v547, %v635
    %v748 = vsub.f32 %v550, %v636
    %v749 = vsub.f32 %v555, %v637
    %v750 = vsub.f32 %v558, %v638
    %v751 = vsub.f32 %v563, %v639
    %v752 = vsub.f32 %v566, %v640
    %v753 = vsub.f32 %v571, %v641
    %v754 = vsub.f32 %v574, %v642
    %v755 = vsub.f32 %v579, %v643
    %v756 = vsub.f32 %v582, %v644
    %v757 = vsub.f32 %v587, %v645
    %v758 = vsub.f32 %v590, %v646
    %v759 = vsub.f32 %v595, %v647
    %v760 = vsub.f32 %v598, %v648
    %v761 = vadd.f32 %v729, 1e-05
    %v762 = vadd.f32 %v730, 1e-05
    %v763 = vadd.f32 %v731, 1e-05
    %v764 = vadd.f32 %v732, 1e-05
    %v765 = vadd.f32 %v733, 1e-05
    %v766 = vadd.f32 %v734, 1e-05
    %v767 = vadd.f32 %v735, 1e-05
    %v768 = vadd.f32 %v736, 1e-05
    %v769 = vadd.f32 %v737, 1e-05
    %v770 = vadd.f32 %v738, 1e-05
    %v771 = vadd.f32 %v739, 1e-05
    %v772 = vadd.f32 %v740, 1e-05
    %v773 = vadd.f32 %v741, 1e-05
    %v774 = vadd.f32 %v742, 1e-05
    %v775 = vadd.f32 %v743, 1e-05
    %v776 = vadd.f32 %v744, 1e-05
    %v777 = vrsqrt.pop %v761
    %v778 = vrsqrt.pop %v762
    %v779 = vrsqrt.pop %v763
    %v780 = vrsqrt.pop %v764
    %v781 = vrsqrt.pop %v765
    %v782 = vrsqrt.pop %v766
    %v783 = vrsqrt.pop %v767
    %v784 = vrsqrt.pop %v768
    %v785 = vrsqrt.pop %v769
    %v786 = vrsqrt.pop %v770
    %v787 = vrsqrt.pop %v771
    %v788 = vrsqrt.pop %v772
    %v789 = vrsqrt.pop %v773
    %v790 = vrsqrt.pop %v774
    %v791 = vrsqrt.pop %v775
    %v792 = vrsqrt.pop %v776
    %v793 = vmul.f32 %v745, %v777
    %v794 = vmul.f32 %v746, %v778
    %v795 = vmul.f32 %v747, %v779
    %v796 = vmul.f32 %v748, %v780
    %v797 = vmul.f32 %v749, %v781
    %v798 = vmul.f32 %v750, %v782
    %v799 = vmul.f32 %v751, %v783
    %v800 = vmul.f32 %v752, %v784
    %v801 = vmul.f32 %v753, %v785
    %v802 = vmul.f32 %v754, %v786
    %v803 = vmul.f32 %v755, %v787
    %v804 = vmul.f32 %v756, %v788
    %v805 = vmul.f32 %v757, %v789
    %v806 = vmul.f32 %v758, %v790
    %v807 = vmul.f32 %v759, %v791
    %v808 = vmul.f32 %v760, %v792
    %v810 = vlaneseq
    %v811 = vshrl.u32 %v810, 7
    %v812 = vsub.s32 0, %v811
    %v813 = vrot.slane %v446, %v812
    %v815 = vmul.f32 %v793, %v813
    %v816 = vmul.f32 %v794, %v813
    %v817 = vmul.f32 %v795, %v813
    %v818 = vmul.f32 %v796, %v813
    %v819 = vmul.f32 %v797, %v813
    %v820 = vmul.f32 %v798, %v813
    %v821 = vmul.f32 %v799, %v813
    %v822 = vmul.f32 %v800, %v813
    %v823 = vmul.f32 %v801, %v813
    %v824 = vmul.f32 %v802, %v813
    %v825 = vmul.f32 %v803, %v813
    %v826 = vmul.f32 %v804, %v813
    %v827 = vmul.f32 %v805, %v813
    %v828 = vmul.f32 %v806, %v813
    %v829 = vmul.f32 %v807, %v813
    %v830 = vmul.f32 %v808, %v813
    %v832 = vlaneseq
    %v833 = vshrl.u32 %v832, 7
    %v834 = vsub.s32 0, %v833
    %v835 = vrot.slane %v447, %v834
    %v837 = vadd.f32 %v815, %v835
    %v838 = vadd.f32 %v816, %v835
    %v839 = vadd.f32 %v817, %v835
    %v840 = vadd.f32 %v818, %v835
    %v841 = vadd.f32 %v819, %v835
    %v842 = vadd.f32 %v820, %v835
    %v843 = vadd.f32 %v821, %v835
    %v844 = vadd.f32 %v822, %v835
    %v845 = vadd.f32 %v823, %v835
    %v846 = vadd.f32 %v824, %v835
    %v847 = vadd.f32 %v825, %v835
    %v848 = vadd.f32 %v826, %v835
    %v849 = vadd.f32 %v827, %v835
    %v850 = vadd.f32 %v828, %v835
    %v851 = vadd.f32 %v829, %v835
    %v852 = vadd.f32 %v830, %v835
    %v853 = vadd.f32 %v837, %v414
    %v854 = vadd.f32 %v838, %v415
    %v855 = vadd.f32 %v839, %v416
    %v856 = vadd.f32 %v840, %v417
    %v857 = vadd.f32 %v841, %v418
    %v858 = vadd.f32 %v842, %v419
    %v859 = vadd.f32 %v843, %v420
    %v860 = vadd.f32 %v844, %v421
    %v861 = vadd.f32 %v845, %v422
    %v862 = vadd.f32 %v846, %v423
    %v863 = vadd.f32 %v847, %v424
    %v864 = vadd.f32 %v848, %v425
    %v865 = vadd.f32 %v849, %v426
    %v866 = vadd.f32 %v850, %v427
    %v867 = vadd.f32 %v851, %v428
    %v868 = vadd.f32 %v852, %v429
    %v869 = vpack.c.bf16 %v854, %v853
    %v870 = vpack.c.bf16 %v856, %v855
    %v871 = vpack.c.bf16 %v858, %v857
    %v872 = vpack.c.bf16 %v860, %v859
    %v873 = vpack.c.bf16 %v862, %v861
    %v874 = vpack.c.bf16 %v864, %v863
    %v875 = vpack.c.bf16 %v866, %v865
    %v876 = vpack.c.bf16 %v868, %v867
    %v877 = vld [vmem:[#allocation8] sm:$0xf]
    %v878 = vld [vmem:[#allocation8 + $0x4] sm:$0xf]
    %v879 = vld [vmem:[#allocation8 + $0x8] sm:$0xf]
    %v880 = vld [vmem:[#allocation8 + $0xc] sm:$0xf]
    %v881 = vld [vmem:[#allocation8 + $0x10] sm:$0xf]
    %v882 = vld [vmem:[#allocation8 + $0x14] sm:$0xf]
    %v883 = vld [vmem:[#allocation8 + $0x18] sm:$0xf]
    %v884 = vld [vmem:[#allocation8 + $0x1c] sm:$0xf]
    %v885 = vld [vmem:[#allocation8 + $0x20] sm:$0xf]
    %v886 = vld [vmem:[#allocation8 + $0x24] sm:$0xf]
    %v887 = vld [vmem:[#allocation8 + $0x28] sm:$0xf]
    %v888 = vld [vmem:[#allocation8 + $0x2c] sm:$0xf]
    %v889 = vld [vmem:[#allocation8 + $0x30] sm:$0xf]
    %v890 = vld [vmem:[#allocation8 + $0x34] sm:$0xf]
    %v891 = vld [vmem:[#allocation8 + $0x38] sm:$0xf]
    %v892 = vld [vmem:[#allocation8 + $0x3c] sm:$0xf]
    %v909 = vunpack.c.l.b16 %v877
    %v910 = vunpack.c.l.b16 %v878
    %v911 = vunpack.c.l.b16 %v879
    %v912 = vunpack.c.l.b16 %v880
    %v913 = vunpack.c.l.b16 %v881
    %v914 = vunpack.c.l.b16 %v882
    %v915 = vunpack.c.l.b16 %v883
    %v916 = vunpack.c.l.b16 %v884
    %v917 = vunpack.c.l.b16 %v885
    %v918 = vunpack.c.l.b16 %v886
    %v919 = vunpack.c.l.b16 %v887
    %v920 = vunpack.c.l.b16 %v888
    %v921 = vunpack.c.l.b16 %v889
    %v922 = vunpack.c.l.b16 %v890
    %v923 = vunpack.c.l.b16 %v891
    %v924 = vunpack.c.l.b16 %v892
    %v925 = vpack.c.b16 %v910, %v909
    %v926 = vpack.c.b16 %v912, %v911
    %v927 = vpack.c.b16 %v914, %v913
    %v928 = vpack.c.b16 %v916, %v915
    %v929 = vpack.c.b16 %v918, %v917
    %v930 = vpack.c.b16 %v920, %v919
    %v931 = vpack.c.b16 %v922, %v921
    %v932 = vpack.c.b16 %v924, %v923
    %941 = vmatprep.subr.bf16.mxu0 0
    %942 = vmatpush1.bf16.msra.mxu0 %v925
    %943 = vmatprep.subr.bf16.mxu0 0
    %944 = vmatpush1.bf16.msra.mxu0 %v926
    %945 = vmatprep.subr.bf16.mxu0 0
    %946 = vmatpush1.bf16.msra.mxu0 %v927
    %947 = vmatprep.subr.bf16.mxu0 0
    %948 = vmatpush1.bf16.msra.mxu0 %v928
    %949 = vmatprep.subr.bf16.mxu0 0
    %950 = vmatpush1.bf16.msra.mxu0 %v929
    %951 = vmatprep.subr.bf16.mxu0 0
    %952 = vmatpush1.bf16.msra.mxu0 %v930
    %953 = vmatprep.subr.bf16.mxu0 0
    %954 = vmatpush1.bf16.msra.mxu0 %v931
    %955 = vmatprep.subr.bf16.mxu0 0
    %956 = vmatpush1.bf16.msra.mxu0 %v932
    %957 = vmatprep.subr.bf16.mxu0 0
    %958 = vmatpush1.bf16.msra.mxu0 0
    %959 = vmatprep.subr.bf16.mxu0 0
    %960 = vmatpush1.bf16.msra.mxu0 0
    %961 = vmatprep.subr.bf16.mxu0 0
    %962 = vmatpush1.bf16.msra.mxu0 0
    %963 = vmatprep.subr.bf16.mxu0 0
    %964 = vmatpush1.bf16.msra.mxu0 0
    %965 = vmatprep.subr.bf16.mxu0 0
    %966 = vmatpush1.bf16.msra.mxu0 0
    %967 = vmatprep.subr.bf16.mxu0 0
    %968 = vmatpush1.bf16.msra.mxu0 0
    %969 = vmatprep.subr.bf16.mxu0 0
    %970 = vmatpush1.bf16.msra.mxu0 0
    %971 = vmatprep.subr.bf16.mxu0 0
    %972 = vmatpush1.bf16.msra.mxu0 0
    %973 = vmatprep.mubr.bf16.mxu0 0
    %974 = vmatmul.mubr.bf16.gmra.mrb[0].mxu0 %v869
    %v975 = vpop.f32.mrb[0].mxu0
    %v976 = vadd.f32 0.0, %v975
    %v977 = vpop.f32.mrb[0].mxu0
    %v978 = vpop.f32.mrb[0].mxu0
    %v979 = vadd.f32 0.0, %v978
    %v980 = vpop.f32.mrb[0].mxu0
    %981 = vmatprep.mubr.bf16.mxu0 0
    %982 = vmatmul.mubr.bf16.gmra.mrb[0].mxu0 %v870
    %v983 = vpop.f32.mrb[0].mxu0
    %v984 = vadd.f32 0.0, %v983
    %v985 = vpop.f32.mrb[0].mxu0
    %v986 = vpop.f32.mrb[0].mxu0
    %v987 = vadd.f32 0.0, %v986
    %v988 = vpop.f32.mrb[0].mxu0
    %989 = vmatprep.mubr.bf16.mxu0 0
    %990 = vmatmul.mubr.bf16.gmra.mrb[0].mxu0 %v871
    %v991 = vpop.f32.mrb[0].mxu0
    %v992 = vadd.f32 0.0, %v991
    %v993 = vpop.f32.mrb[0].mxu0
    %v994 = vpop.f32.mrb[0].mxu0
    %v995 = vadd.f32 0.0, %v994
    %v996 = vpop.f32.mrb[0].mxu0
    %997 = vmatprep.mubr.bf16.mxu0 0
    %998 = vmatmul.mubr.bf16.gmra.mrb[0].mxu0 %v872
    %v999 = vpop.f32.mrb[0].mxu0
    %v1000 = vadd.f32 0.0, %v999
    %v1001 = vpop.f32.mrb[0].mxu0
    %v1002 = vpop.f32.mrb[0].mxu0
    %v1003 = vadd.f32 0.0, %v1002
    %v1004 = vpop.f32.mrb[0].mxu0
    %1005 = vmatprep.mubr.bf16.mxu0 0
    %1006 = vmatmul.mubr.bf16.gmra.mrb[0].mxu0 %v873
    %v1007 = vpop.f32.mrb[0].mxu0
    %v1008 = vadd.f32 0.0, %v1007
    %v1009 = vpop.f32.mrb[0].mxu0
    %v1010 = vpop.f32.mrb[0].mxu0
    %v1011 = vadd.f32 0.0, %v1010
    %v1012 = vpop.f32.mrb[0].mxu0
    %1013 = vmatprep.mubr.bf16.mxu0 0
    %1014 = vmatmul.mubr.bf16.gmra.mrb[0].mxu0 %v874
    %v1015 = vpop.f32.mrb[0].mxu0
    %v1016 = vadd.f32 0.0, %v1015
    %v1017 = vpop.f32.mrb[0].mxu0
    %v1018 = vpop.f32.mrb[0].mxu0
    %v1019 = vadd.f32 0.0, %v1018
    %v1020 = vpop.f32.mrb[0].mxu0
    %1021 = vmatprep.mubr.bf16.mxu0 0
    %1022 = vmatmul.mubr.bf16.gmra.mrb[0].mxu0 %v875
    %v1023 = vpop.f32.mrb[0].mxu0
    %v1024 = vadd.f32 0.0, %v1023
    %v1025 = vpop.f32.mrb[0].mxu0
    %v1026 = vpop.f32.mrb[0].mxu0
    %v1027 = vadd.f32 0.0, %v1026
    %v1028 = vpop.f32.mrb[0].mxu0
    %1029 = vmatprep.mubr.bf16.mxu0 0
    %1030 = vmatmul.mubr.bf16.gmra.mrb[0].mxu0 %v876
    %v1031 = vpop.f32.mrb[0].mxu0
    %v1032 = vadd.f32 0.0, %v1031
    %v1033 = vpop.f32.mrb[0].mxu0
    %v1034 = vpop.f32.mrb[0].mxu0
    %v1035 = vadd.f32 0.0, %v1034
    %v1036 = vpop.f32.mrb[0].mxu0
    %1037 = vdwg.mxu0
    %v1038 = vmul.f32 %v976, 0.5
    %v1039 = vmul.f32 %v979, 0.5
    %v1040 = vmul.f32 %v984, 0.5
    %v1041 = vmul.f32 %v987, 0.5
    %v1042 = vmul.f32 %v992, 0.5
    %v1043 = vmul.f32 %v995, 0.5
    %v1044 = vmul.f32 %v1000, 0.5
    %v1045 = vmul.f32 %v1003, 0.5
    %v1046 = vmul.f32 %v1008, 0.5
    %v1047 = vmul.f32 %v1011, 0.5
    %v1048 = vmul.f32 %v1016, 0.5
    %v1049 = vmul.f32 %v1019, 0.5
    %v1050 = vmul.f32 %v1024, 0.5
    %v1051 = vmul.f32 %v1027, 0.5
    %v1052 = vmul.f32 %v1032, 0.5
    %v1053 = vmul.f32 %v1035, 0.5
    %v1054 = vtanh.pop %v1038
    %v1055 = vtanh.pop %v1039
    %v1056 = vtanh.pop %v1040
    %v1057 = vtanh.pop %v1041
    %v1058 = vtanh.pop %v1042
    %v1059 = vtanh.pop %v1043
    %v1060 = vtanh.pop %v1044
    %v1061 = vtanh.pop %v1045
    %v1062 = vtanh.pop %v1046
    %v1063 = vtanh.pop %v1047
    %v1064 = vtanh.pop %v1048
    %v1065 = vtanh.pop %v1049
    %v1066 = vtanh.pop %v1050
    %v1067 = vtanh.pop %v1051
    %v1068 = vtanh.pop %v1052
    %v1069 = vtanh.pop %v1053
    %v1070 = vadd.f32 %v1054, 1.0
    %v1071 = vadd.f32 %v1055, 1.0
    %v1072 = vadd.f32 %v1056, 1.0
    %v1073 = vadd.f32 %v1057, 1.0
    %v1074 = vadd.f32 %v1058, 1.0
    %v1075 = vadd.f32 %v1059, 1.0
    %v1076 = vadd.f32 %v1060, 1.0
    %v1077 = vadd.f32 %v1061, 1.0
    %v1078 = vadd.f32 %v1062, 1.0
    %v1079 = vadd.f32 %v1063, 1.0
    %v1080 = vadd.f32 %v1064, 1.0
    %v1081 = vadd.f32 %v1065, 1.0
    %v1082 = vadd.f32 %v1066, 1.0
    %v1083 = vadd.f32 %v1067, 1.0
    %v1084 = vadd.f32 %v1068, 1.0
    %v1085 = vadd.f32 %v1069, 1.0
    %v1086 = vmul.f32 %v1070, 0.5
    %v1087 = vmul.f32 %v1071, 0.5
    %v1088 = vmul.f32 %v1072, 0.5
    %v1089 = vmul.f32 %v1073, 0.5
    %v1090 = vmul.f32 %v1074, 0.5
    %v1091 = vmul.f32 %v1075, 0.5
    %v1092 = vmul.f32 %v1076, 0.5
    %v1093 = vmul.f32 %v1077, 0.5
    %v1094 = vmul.f32 %v1078, 0.5
    %v1095 = vmul.f32 %v1079, 0.5
    %v1096 = vmul.f32 %v1080, 0.5
    %v1097 = vmul.f32 %v1081, 0.5
    %v1098 = vmul.f32 %v1082, 0.5
    %v1099 = vmul.f32 %v1083, 0.5
    %v1100 = vmul.f32 %v1084, 0.5
    %v1101 = vmul.f32 %v1085, 0.5
    %v1102 = vmul.f32 %v976, %v1086
    %v1103 = vmul.f32 %v979, %v1087
    %v1104 = vmul.f32 %v984, %v1088
    %v1105 = vmul.f32 %v987, %v1089
    %v1106 = vmul.f32 %v992, %v1090
    %v1107 = vmul.f32 %v995, %v1091
    %v1108 = vmul.f32 %v1000, %v1092
    %v1109 = vmul.f32 %v1003, %v1093
    %v1110 = vmul.f32 %v1008, %v1094
    %v1111 = vmul.f32 %v1011, %v1095
    %v1112 = vmul.f32 %v1016, %v1096
    %v1113 = vmul.f32 %v1019, %v1097
    %v1114 = vmul.f32 %v1024, %v1098
    %v1115 = vmul.f32 %v1027, %v1099
    %v1116 = vmul.f32 %v1032, %v1100
    %v1117 = vmul.f32 %v1035, %v1101
    %v1118 = vpack.c.bf16 %v1103, %v1102
    %v1119 = vpack.c.bf16 %v1105, %v1104
    %v1120 = vpack.c.bf16 %v1107, %v1106
    %v1121 = vpack.c.bf16 %v1109, %v1108
    %v1122 = vpack.c.bf16 %v1111, %v1110
    %v1123 = vpack.c.bf16 %v1113, %v1112
    %v1124 = vpack.c.bf16 %v1115, %v1114
    %v1125 = vpack.c.bf16 %v1117, %v1116
    %1126 = vmatprep.subr.bf16.mxu0 0
    %1127 = vmatpush1.bf16.msra.mxu0 %v1118
    %1128 = vmatprep.subr.bf16.mxu0 0
    %1129 = vmatpush1.bf16.msra.mxu0 %v1119
    %1130 = vmatprep.subr.bf16.mxu0 0
    %1131 = vmatpush1.bf16.msra.mxu0 %v1120
    %1132 = vmatprep.subr.bf16.mxu0 0
    %1133 = vmatpush1.bf16.msra.mxu0 %v1121
    %1134 = vmatprep.subr.bf16.mxu0 0
    %1135 = vmatpush1.bf16.msra.mxu0 %v1122
    %1136 = vmatprep.subr.bf16.mxu0 0
    %1137 = vmatpush1.bf16.msra.mxu0 %v1123
    %1138 = vmatprep.subr.bf16.mxu0 0
    %1139 = vmatpush1.bf16.msra.mxu0 %v1124
    %1140 = vmatprep.subr.bf16.mxu0 0
    %1141 = vmatpush1.bf16.msra.mxu0 %v1125
    %1142 = vmatprep.subr.bf16.mxu0 0
    %1143 = vmatpush1.bf16.msra.mxu0 0
    %1144 = vmatprep.subr.bf16.mxu0 0
    %1145 = vmatpush1.bf16.msra.mxu0 0
    %1146 = vmatprep.subr.bf16.mxu0 0
    %1147 = vmatpush1.bf16.msra.mxu0 0
    %1148 = vmatprep.subr.bf16.mxu0 0
    %1149 = vmatpush1.bf16.msra.mxu0 0
    %1150 = vmatprep.subr.bf16.mxu0 0
    %1151 = vmatpush1.bf16.msra.mxu0 0
    %1152 = vmatprep.subr.bf16.mxu0 0
    %1153 = vmatpush1.bf16.msra.mxu0 0
    %1154 = vmatprep.subr.bf16.mxu0 0
    %1155 = vmatpush1.bf16.msra.mxu0 0
    %1156 = vmatprep.subr.bf16.mxu0 0
    %1157 = vmatpush1.bf16.msra.mxu0 0
    %1158 = vmatprep.mubr.bf16.mxu0 0
    %1159 = vmatmul.mubr.bf16.gmra.mrb[0].mxu0 %v488
    %v1160 = vpop.f32.mrb[0].mxu0
    %v1161 = vadd.f32 0.0, %v1160
    %v1162 = vpop.f32.mrb[0].mxu0
    %v1163 = vpop.f32.mrb[0].mxu0
    %v1164 = vadd.f32 0.0, %v1163
    %v1165 = vpop.f32.mrb[0].mxu0
    %1166 = vmatprep.mubr.bf16.mxu0 0
    %1167 = vmatmul.mubr.bf16.gmra.mrb[0].mxu0 %v489
    %v1168 = vpop.f32.mrb[0].mxu0
    %v1169 = vadd.f32 0.0, %v1168
    %v1170 = vpop.f32.mrb[0].mxu0
    %v1171 = vpop.f32.mrb[0].mxu0
    %v1172 = vadd.f32 0.0, %v1171
    %v1173 = vpop.f32.mrb[0].mxu0
    %1174 = vmatprep.mubr.bf16.mxu0 0
    %1175 = vmatmul.mubr.bf16.gmra.mrb[0].mxu0 %v490
    %v1176 = vpop.f32.mrb[0].mxu0
    %v1177 = vadd.f32 0.0, %v1176
    %v1178 = vpop.f32.mrb[0].mxu0
    %v1179 = vpop.f32.mrb[0].mxu0
    %v1180 = vadd.f32 0.0, %v1179
    %v1181 = vpop.f32.mrb[0].mxu0
    %1182 = vmatprep.mubr.bf16.mxu0 0
    %1183 = vmatmul.mubr.bf16.gmra.mrb[0].mxu0 %v491
    %v1184 = vpop.f32.mrb[0].mxu0
    %v1185 = vadd.f32 0.0, %v1184
    %v1186 = vpop.f32.mrb[0].mxu0
    %v1187 = vpop.f32.mrb[0].mxu0
    %v1188 = vadd.f32 0.0, %v1187
    %v1189 = vpop.f32.mrb[0].mxu0
    %1190 = vmatprep.mubr.bf16.mxu0 0
    %1191 = vmatmul.mubr.bf16.gmra.mrb[0].mxu0 %v492
    %v1192 = vpop.f32.mrb[0].mxu0
    %v1193 = vadd.f32 0.0, %v1192
    %v1194 = vpop.f32.mrb[0].mxu0
    %v1195 = vpop.f32.mrb[0].mxu0
    %v1196 = vadd.f32 0.0, %v1195
    %v1197 = vpop.f32.mrb[0].mxu0
    %1198 = vmatprep.mubr.bf16.mxu0 0
    %1199 = vmatmul.mubr.bf16.gmra.mrb[0].mxu0 %v493
    %v1200 = vpop.f32.mrb[0].mxu0
    %v1201 = vadd.f32 0.0, %v1200
    %v1202 = vpop.f32.mrb[0].mxu0
    %v1203 = vpop.f32.mrb[0].mxu0
    %v1204 = vadd.f32 0.0, %v1203
    %v1205 = vpop.f32.mrb[0].mxu0
    %1206 = vmatprep.mubr.bf16.mxu0 0
    %1207 = vmatmul.mubr.bf16.gmra.mrb[0].mxu0 %v494
    %v1208 = vpop.f32.mrb[0].mxu0
    %v1209 = vadd.f32 0.0, %v1208
    %v1210 = vpop.f32.mrb[0].mxu0
    %v1211 = vpop.f32.mrb[0].mxu0
    %v1212 = vadd.f32 0.0, %v1211
    %v1213 = vpop.f32.mrb[0].mxu0
    %1214 = vmatprep.mubr.bf16.mxu0 0
    %1215 = vmatmul.mubr.bf16.gmra.mrb[0].mxu0 %v495
    %v1216 = vpop.f32.mrb[0].mxu0
    %v1217 = vadd.f32 0.0, %v1216
    %v1218 = vpop.f32.mrb[0].mxu0
    %v1219 = vpop.f32.mrb[0].mxu0
    %v1220 = vadd.f32 0.0, %v1219
    %v1221 = vpop.f32.mrb[0].mxu0
    %1222 = vdwg.mxu0
    %1223 = vadd.xlane.f32.xlu0 %v1161
    %v1224 = vpop.xlane.xlu0 %1223
    %1225 = vadd.xlane.f32.xlu0 %v1164
    %v1226 = vpop.xlane.xlu0 %1225
    %1227 = vadd.xlane.f32.xlu0 %v1169
    %v1228 = vpop.xlane.xlu0 %1227
    %1229 = vadd.xlane.f32.xlu0 %v1172
    %v1230 = vpop.xlane.xlu0 %1229
    %1231 = vadd.xlane.f32.xlu0 %v1177
    %v1232 = vpop.xlane.xlu0 %1231
    %1233 = vadd.xlane.f32.xlu0 %v1180
    %v1234 = vpop.xlane.xlu0 %1233
    %1235 = vadd.xlane.f32.xlu0 %v1185
    %v1236 = vpop.xlane.xlu0 %1235
    %1237 = vadd.xlane.f32.xlu0 %v1188
    %v1238 = vpop.xlane.xlu0 %1237
    %1239 = vadd.xlane.f32.xlu0 %v1193
    %v1240 = vpop.xlane.xlu0 %1239
    %1241 = vadd.xlane.f32.xlu0 %v1196
    %v1242 = vpop.xlane.xlu0 %1241
    %1243 = vadd.xlane.f32.xlu0 %v1201
    %v1244 = vpop.xlane.xlu0 %1243
    %1245 = vadd.xlane.f32.xlu0 %v1204
    %v1246 = vpop.xlane.xlu0 %1245
    %1247 = vadd.xlane.f32.xlu0 %v1209
    %v1248 = vpop.xlane.xlu0 %1247
    %1249 = vadd.xlane.f32.xlu0 %v1212
    %v1250 = vpop.xlane.xlu0 %1249
    %1251 = vadd.xlane.f32.xlu0 %v1217
    %v1252 = vpop.xlane.xlu0 %1251
    %1253 = vadd.xlane.f32.xlu0 %v1220
    %v1254 = vpop.xlane.xlu0 %1253
    %v1255 = vmul.f32 %v1224, 0.03125
    %v1256 = vmul.f32 %v1226, 0.03125
    %v1257 = vmul.f32 %v1228, 0.03125
    %v1258 = vmul.f32 %v1230, 0.03125
    %v1259 = vmul.f32 %v1232, 0.03125
    %v1260 = vmul.f32 %v1234, 0.03125
    %v1261 = vmul.f32 %v1236, 0.03125
    %v1262 = vmul.f32 %v1238, 0.03125
    %v1263 = vmul.f32 %v1240, 0.03125
    %v1264 = vmul.f32 %v1242, 0.03125
    %v1265 = vmul.f32 %v1244, 0.03125
    %v1266 = vmul.f32 %v1246, 0.03125
    %v1267 = vmul.f32 %v1248, 0.03125
    %v1268 = vmul.f32 %v1250, 0.03125
    %v1269 = vmul.f32 %v1252, 0.03125
    %v1270 = vmul.f32 %v1254, 0.03125
    %v1271 = vmul.f32 %v1161, %v1161
    %v1272 = vmul.f32 %v1164, %v1164
    %v1273 = vmul.f32 %v1169, %v1169
    %v1274 = vmul.f32 %v1172, %v1172
    %v1275 = vmul.f32 %v1177, %v1177
    %v1276 = vmul.f32 %v1180, %v1180
    %v1277 = vmul.f32 %v1185, %v1185
    %v1278 = vmul.f32 %v1188, %v1188
    %v1279 = vmul.f32 %v1193, %v1193
    %v1280 = vmul.f32 %v1196, %v1196
    %v1281 = vmul.f32 %v1201, %v1201
    %v1282 = vmul.f32 %v1204, %v1204
    %v1283 = vmul.f32 %v1209, %v1209
    %v1284 = vmul.f32 %v1212, %v1212
    %v1285 = vmul.f32 %v1217, %v1217
    %v1286 = vmul.f32 %v1220, %v1220
    %1287 = vadd.xlane.f32.xlu0 %v1271
    %v1288 = vpop.xlane.xlu0 %1287
    %1289 = vadd.xlane.f32.xlu0 %v1272
    %v1290 = vpop.xlane.xlu0 %1289
    %1291 = vadd.xlane.f32.xlu0 %v1273
    %v1292 = vpop.xlane.xlu0 %1291
    %1293 = vadd.xlane.f32.xlu0 %v1274
    %v1294 = vpop.xlane.xlu0 %1293
    %1295 = vadd.xlane.f32.xlu0 %v1275
    %v1296 = vpop.xlane.xlu0 %1295
    %1297 = vadd.xlane.f32.xlu0 %v1276
    %v1298 = vpop.xlane.xlu0 %1297
    %1299 = vadd.xlane.f32.xlu0 %v1277
    %v1300 = vpop.xlane.xlu0 %1299
    %1301 = vadd.xlane.f32.xlu0 %v1278
    %v1302 = vpop.xlane.xlu0 %1301
    %1303 = vadd.xlane.f32.xlu0 %v1279
    %v1304 = vpop.xlane.xlu0 %1303
    %1305 = vadd.xlane.f32.xlu0 %v1280
    %v1306 = vpop.xlane.xlu0 %1305
    %1307 = vadd.xlane.f32.xlu0 %v1281
    %v1308 = vpop.xlane.xlu0 %1307
    %1309 = vadd.xlane.f32.xlu0 %v1282
    %v1310 = vpop.xlane.xlu0 %1309
    %1311 = vadd.xlane.f32.xlu0 %v1283
    %v1312 = vpop.xlane.xlu0 %1311
    %1313 = vadd.xlane.f32.xlu0 %v1284
    %v1314 = vpop.xlane.xlu0 %1313
    %1315 = vadd.xlane.f32.xlu0 %v1285
    %v1316 = vpop.xlane.xlu0 %1315
    %1317 = vadd.xlane.f32.xlu0 %v1286
    %v1318 = vpop.xlane.xlu0 %1317
    %v1319 = vmul.f32 %v1288, 0.03125
    %v1320 = vmul.f32 %v1290, 0.03125
    %v1321 = vmul.f32 %v1292, 0.03125
    %v1322 = vmul.f32 %v1294, 0.03125
    %v1323 = vmul.f32 %v1296, 0.03125
    %v1324 = vmul.f32 %v1298, 0.03125
    %v1325 = vmul.f32 %v1300, 0.03125
    %v1326 = vmul.f32 %v1302, 0.03125
    %v1327 = vmul.f32 %v1304, 0.03125
    %v1328 = vmul.f32 %v1306, 0.03125
    %v1329 = vmul.f32 %v1308, 0.03125
    %v1330 = vmul.f32 %v1310, 0.03125
    %v1331 = vmul.f32 %v1312, 0.03125
    %v1332 = vmul.f32 %v1314, 0.03125
    %v1333 = vmul.f32 %v1316, 0.03125
    %v1334 = vmul.f32 %v1318, 0.03125
    %v1335 = vmul.f32 %v1255, %v1255
    %v1336 = vmul.f32 %v1256, %v1256
    %v1337 = vmul.f32 %v1257, %v1257
    %v1338 = vmul.f32 %v1258, %v1258
    %v1339 = vmul.f32 %v1259, %v1259
    %v1340 = vmul.f32 %v1260, %v1260
    %v1341 = vmul.f32 %v1261, %v1261
    %v1342 = vmul.f32 %v1262, %v1262
    %v1343 = vmul.f32 %v1263, %v1263
    %v1344 = vmul.f32 %v1264, %v1264
    %v1345 = vmul.f32 %v1265, %v1265
    %v1346 = vmul.f32 %v1266, %v1266
    %v1347 = vmul.f32 %v1267, %v1267
    %v1348 = vmul.f32 %v1268, %v1268
    %v1349 = vmul.f32 %v1269, %v1269
    %v1350 = vmul.f32 %v1270, %v1270
    %v1351 = vsub.f32 %v1319, %v1335
    %v1352 = vsub.f32 %v1320, %v1336
    %v1353 = vsub.f32 %v1321, %v1337
    %v1354 = vsub.f32 %v1322, %v1338
    %v1355 = vsub.f32 %v1323, %v1339
    %v1356 = vsub.f32 %v1324, %v1340
    %v1357 = vsub.f32 %v1325, %v1341
    %v1358 = vsub.f32 %v1326, %v1342
    %v1359 = vsub.f32 %v1327, %v1343
    %v1360 = vsub.f32 %v1328, %v1344
    %v1361 = vsub.f32 %v1329, %v1345
    %v1362 = vsub.f32 %v1330, %v1346
    %v1363 = vsub.f32 %v1331, %v1347
    %v1364 = vsub.f32 %v1332, %v1348
    %v1365 = vsub.f32 %v1333, %v1349
    %v1366 = vsub.f32 %v1334, %v1350
    %v1367 = vsub.f32 %v1161, %v1255
    %v1368 = vsub.f32 %v1164, %v1256
    %v1369 = vsub.f32 %v1169, %v1257
    %v1370 = vsub.f32 %v1172, %v1258
    %v1371 = vsub.f32 %v1177, %v1259
    %v1372 = vsub.f32 %v1180, %v1260
    %v1373 = vsub.f32 %v1185, %v1261
    %v1374 = vsub.f32 %v1188, %v1262
    %v1375 = vsub.f32 %v1193, %v1263
    %v1376 = vsub.f32 %v1196, %v1264
    %v1377 = vsub.f32 %v1201, %v1265
    %v1378 = vsub.f32 %v1204, %v1266
    %v1379 = vsub.f32 %v1209, %v1267
    %v1380 = vsub.f32 %v1212, %v1268
    %v1381 = vsub.f32 %v1217, %v1269
    %v1382 = vsub.f32 %v1220, %v1270
    %v1383 = vadd.f32 %v1351, 1e-05
    %v1384 = vadd.f32 %v1352, 1e-05
    %v1385 = vadd.f32 %v1353, 1e-05
    %v1386 = vadd.f32 %v1354, 1e-05
    %v1387 = vadd.f32 %v1355, 1e-05
    %v1388 = vadd.f32 %v1356, 1e-05
    %v1389 = vadd.f32 %v1357, 1e-05
    %v1390 = vadd.f32 %v1358, 1e-05
    %v1391 = vadd.f32 %v1359, 1e-05
    %v1392 = vadd.f32 %v1360, 1e-05
    %v1393 = vadd.f32 %v1361, 1e-05
    %v1394 = vadd.f32 %v1362, 1e-05
    %v1395 = vadd.f32 %v1363, 1e-05
    %v1396 = vadd.f32 %v1364, 1e-05
    %v1397 = vadd.f32 %v1365, 1e-05
    %v1398 = vadd.f32 %v1366, 1e-05
    %v1399 = vrsqrt.pop %v1383
    %v1400 = vrsqrt.pop %v1384
    %v1401 = vrsqrt.pop %v1385
    %v1402 = vrsqrt.pop %v1386
    %v1403 = vrsqrt.pop %v1387
    %v1404 = vrsqrt.pop %v1388
    %v1405 = vrsqrt.pop %v1389
    %v1406 = vrsqrt.pop %v1390
    %v1407 = vrsqrt.pop %v1391
    %v1408 = vrsqrt.pop %v1392
    %v1409 = vrsqrt.pop %v1393
    %v1410 = vrsqrt.pop %v1394
    %v1411 = vrsqrt.pop %v1395
    %v1412 = vrsqrt.pop %v1396
    %v1413 = vrsqrt.pop %v1397
    %v1414 = vrsqrt.pop %v1398
    %v1415 = vmul.f32 %v1367, %v1399
    %v1416 = vmul.f32 %v1368, %v1400
    %v1417 = vmul.f32 %v1369, %v1401
    %v1418 = vmul.f32 %v1370, %v1402
    %v1419 = vmul.f32 %v1371, %v1403
    %v1420 = vmul.f32 %v1372, %v1404
    %v1421 = vmul.f32 %v1373, %v1405
    %v1422 = vmul.f32 %v1374, %v1406
    %v1423 = vmul.f32 %v1375, %v1407
    %v1424 = vmul.f32 %v1376, %v1408
    %v1425 = vmul.f32 %v1377, %v1409
    %v1426 = vmul.f32 %v1378, %v1410
    %v1427 = vmul.f32 %v1379, %v1411
    %v1428 = vmul.f32 %v1380, %v1412
    %v1429 = vmul.f32 %v1381, %v1413
    %v1430 = vmul.f32 %v1382, %v1414
    %v1431 = vmul.f32 %v1415, %v813
    %v1432 = vmul.f32 %v1416, %v813
    %v1433 = vmul.f32 %v1417, %v813
    %v1434 = vmul.f32 %v1418, %v813
    %v1435 = vmul.f32 %v1419, %v813
    %v1436 = vmul.f32 %v1420, %v813
    %v1437 = vmul.f32 %v1421, %v813
    %v1438 = vmul.f32 %v1422, %v813
    %v1439 = vmul.f32 %v1423, %v813
    %v1440 = vmul.f32 %v1424, %v813
    %v1441 = vmul.f32 %v1425, %v813
    %v1442 = vmul.f32 %v1426, %v813
    %v1443 = vmul.f32 %v1427, %v813
    %v1444 = vmul.f32 %v1428, %v813
    %v1445 = vmul.f32 %v1429, %v813
    %v1446 = vmul.f32 %v1430, %v813
    %v1447 = vadd.f32 %v1431, %v835
    %v1448 = vadd.f32 %v1432, %v835
    %v1449 = vadd.f32 %v1433, %v835
    %v1450 = vadd.f32 %v1434, %v835
    %v1451 = vadd.f32 %v1435, %v835
    %v1452 = vadd.f32 %v1436, %v835
    %v1453 = vadd.f32 %v1437, %v835
    %v1454 = vadd.f32 %v1438, %v835
    %v1455 = vadd.f32 %v1439, %v835
    %v1456 = vadd.f32 %v1440, %v835
    %v1457 = vadd.f32 %v1441, %v835
    %v1458 = vadd.f32 %v1442, %v835
    %v1459 = vadd.f32 %v1443, %v835
    %v1460 = vadd.f32 %v1444, %v835
    %v1461 = vadd.f32 %v1445, %v835
    %v1462 = vadd.f32 %v1446, %v835
    %v1463 = vadd.f32 %v1447, %v414
    %v1464 = vadd.f32 %v1448, %v415
    %v1465 = vadd.f32 %v1449, %v416
    %v1466 = vadd.f32 %v1450, %v417
    %v1467 = vadd.f32 %v1451, %v418
    %v1468 = vadd.f32 %v1452, %v419
    %v1469 = vadd.f32 %v1453, %v420
    %v1470 = vadd.f32 %v1454, %v421
    %v1471 = vadd.f32 %v1455, %v422
    %v1472 = vadd.f32 %v1456, %v423
    %v1473 = vadd.f32 %v1457, %v424
    %v1474 = vadd.f32 %v1458, %v425
    %v1475 = vadd.f32 %v1459, %v426
    %v1476 = vadd.f32 %v1460, %v427
    %v1477 = vadd.f32 %v1461, %v428
    %v1478 = vadd.f32 %v1462, %v429
    %v1479 = vpack.c.bf16 %v1464, %v1463
    %v1480 = vpack.c.bf16 %v1466, %v1465
    %v1481 = vpack.c.bf16 %v1468, %v1467
    %v1482 = vpack.c.bf16 %v1470, %v1469
    %v1483 = vpack.c.bf16 %v1472, %v1471
    %v1484 = vpack.c.bf16 %v1474, %v1473
    %v1485 = vpack.c.bf16 %v1476, %v1475
    %v1486 = vpack.c.bf16 %v1478, %v1477
    %s1487 = scalar_lea.vmem [#allocation8], 64
    %v1488 = vld [vmem:[%s1487] sm:$0xf]
    %v1489 = vld [vmem:[%s1487 + $0x4] sm:$0xf]
    %v1490 = vld [vmem:[%s1487 + $0x8] sm:$0xf]
    %v1491 = vld [vmem:[%s1487 + $0xc] sm:$0xf]
    %v1492 = vld [vmem:[%s1487 + $0x10] sm:$0xf]
    %v1493 = vld [vmem:[%s1487 + $0x14] sm:$0xf]
    %v1494 = vld [vmem:[%s1487 + $0x18] sm:$0xf]
    %v1495 = vld [vmem:[%s1487 + $0x1c] sm:$0xf]
    %v1496 = vld [vmem:[%s1487 + $0x20] sm:$0xf]
    %v1497 = vld [vmem:[%s1487 + $0x24] sm:$0xf]
    %v1498 = vld [vmem:[%s1487 + $0x28] sm:$0xf]
    %v1499 = vld [vmem:[%s1487 + $0x2c] sm:$0xf]
    %v1500 = vld [vmem:[%s1487 + $0x30] sm:$0xf]
    %v1501 = vld [vmem:[%s1487 + $0x34] sm:$0xf]
    %v1502 = vld [vmem:[%s1487 + $0x38] sm:$0xf]
    %v1503 = vld [vmem:[%s1487 + $0x3c] sm:$0xf]
    %v1520 = vunpack.c.l.b16 %v1488
    %v1521 = vunpack.c.l.b16 %v1489
    %v1522 = vunpack.c.l.b16 %v1490
    %v1523 = vunpack.c.l.b16 %v1491
    %v1524 = vunpack.c.l.b16 %v1492
    %v1525 = vunpack.c.l.b16 %v1493
    %v1526 = vunpack.c.l.b16 %v1494
    %v1527 = vunpack.c.l.b16 %v1495
    %v1528 = vunpack.c.l.b16 %v1496
    %v1529 = vunpack.c.l.b16 %v1497
    %v1530 = vunpack.c.l.b16 %v1498
    %v1531 = vunpack.c.l.b16 %v1499
    %v1532 = vunpack.c.l.b16 %v1500
    %v1533 = vunpack.c.l.b16 %v1501
    %v1534 = vunpack.c.l.b16 %v1502
    %v1535 = vunpack.c.l.b16 %v1503
    %v1536 = vpack.c.b16 %v1521, %v1520
    %v1537 = vpack.c.b16 %v1523, %v1522
    %v1538 = vpack.c.b16 %v1525, %v1524
    %v1539 = vpack.c.b16 %v1527, %v1526
    %v1540 = vpack.c.b16 %v1529, %v1528
    %v1541 = vpack.c.b16 %v1531, %v1530
    %v1542 = vpack.c.b16 %v1533, %v1532
    %v1543 = vpack.c.b16 %v1535, %v1534
    %1552 = vmatprep.subr.bf16.mxu0 0
    %1553 = vmatpush1.bf16.msra.mxu0 %v1536
    %1554 = vmatprep.subr.bf16.mxu0 0
    %1555 = vmatpush1.bf16.msra.mxu0 %v1537
    %1556 = vmatprep.subr.bf16.mxu0 0
    %1557 = vmatpush1.bf16.msra.mxu0 %v1538
    %1558 = vmatprep.subr.bf16.mxu0 0
    %1559 = vmatpush1.bf16.msra.mxu0 %v1539
    %1560 = vmatprep.subr.bf16.mxu0 0
    %1561 = vmatpush1.bf16.msra.mxu0 %v1540
    %1562 = vmatprep.subr.bf16.mxu0 0
    %1563 = vmatpush1.bf16.msra.mxu0 %v1541
    %1564 = vmatprep.subr.bf16.mxu0 0
    %1565 = vmatpush1.bf16.msra.mxu0 %v1542
    %1566 = vmatprep.subr.bf16.mxu0 0
    %1567 = vmatpush1.bf16.msra.mxu0 %v1543
    %1568 = vmatprep.subr.bf16.mxu0 0
    %1569 = vmatpush1.bf16.msra.mxu0 0
    %1570 = vmatprep.subr.bf16.mxu0 0
    %1571 = vmatpush1.bf16.msra.mxu0 0
    %1572 = vmatprep.subr.bf16.mxu0 0
    %1573 = vmatpush1.bf16.msra.mxu0 0
    %1574 = vmatprep.subr.bf16.mxu0 0
    %1575 = vmatpush1.bf16.msra.mxu0 0
    %1576 = vmatprep.subr.bf16.mxu0 0
    %1577 = vmatpush1.bf16.msra.mxu0 0
    %1578 = vmatprep.subr.bf16.mxu0 0
    %1579 = vmatpush1.bf16.msra.mxu0 0
    %1580 = vmatprep.subr.bf16.mxu0 0
    %1581 = vmatpush1.bf16.msra.mxu0 0
    %1582 = vmatprep.subr.bf16.mxu0 0
    %1583 = vmatpush1.bf16.msra.mxu0 0
    %1584 = vmatprep.mubr.bf16.mxu0 0
    %1585 = vmatmul.mubr.bf16.gmra.mrb[0].mxu0 %v1479
    %v1586 = vpop.f32.mrb[0].mxu0
    %v1587 = vadd.f32 0.0, %v1586
    %v1588 = vpop.f32.mrb[0].mxu0
    %v1589 = vpop.f32.mrb[0].mxu0
    %v1590 = vadd.f32 0.0, %v1589
    %v1591 = vpop.f32.mrb[0].mxu0
    %1592 = vmatprep.mubr.bf16.mxu0 0
    %1593 = vmatmul.mubr.bf16.gmra.mrb[0].mxu0 %v1480
    %v1594 = vpop.f32.mrb[0].mxu0
    %v1595 = vadd.f32 0.0, %v1594
    %v1596 = vpop.f32.mrb[0].mxu0
    %v1597 = vpop.f32.mrb[0].mxu0
    %v1598 = vadd.f32 0.0, %v1597
    %v1599 = vpop.f32.mrb[0].mxu0
    %1600 = vmatprep.mubr.bf16.mxu0 0
    %1601 = vmatmul.mubr.bf16.gmra.mrb[0].mxu0 %v1481
    %v1602 = vpop.f32.mrb[0].mxu0
    %v1603 = vadd.f32 0.0, %v1602
    %v1604 = vpop.f32.mrb[0].mxu0
    %v1605 = vpop.f32.mrb[0].mxu0
    %v1606 = vadd.f32 0.0, %v1605
    %v1607 = vpop.f32.mrb[0].mxu0
    %1608 = vmatprep.mubr.bf16.mxu0 0
    %1609 = vmatmul.mubr.bf16.gmra.mrb[0].mxu0 %v1482
    %v1610 = vpop.f32.mrb[0].mxu0
    %v1611 = vadd.f32 0.0, %v1610
    %v1612 = vpop.f32.mrb[0].mxu0
    %v1613 = vpop.f32.mrb[0].mxu0
    %v1614 = vadd.f32 0.0, %v1613
    %v1615 = vpop.f32.mrb[0].mxu0
    %1616 = vmatprep.mubr.bf16.mxu0 0
    %1617 = vmatmul.mubr.bf16.gmra.mrb[0].mxu0 %v1483
    %v1618 = vpop.f32.mrb[0].mxu0
    %v1619 = vadd.f32 0.0, %v1618
    %v1620 = vpop.f32.mrb[0].mxu0
    %v1621 = vpop.f32.mrb[0].mxu0
    %v1622 = vadd.f32 0.0, %v1621
    %v1623 = vpop.f32.mrb[0].mxu0
    %1624 = vmatprep.mubr.bf16.mxu0 0
    %1625 = vmatmul.mubr.bf16.gmra.mrb[0].mxu0 %v1484
    %v1626 = vpop.f32.mrb[0].mxu0
    %v1627 = vadd.f32 0.0, %v1626
    %v1628 = vpop.f32.mrb[0].mxu0
    %v1629 = vpop.f32.mrb[0].mxu0
    %v1630 = vadd.f32 0.0, %v1629
    %v1631 = vpop.f32.mrb[0].mxu0
    %1632 = vmatprep.mubr.bf16.mxu0 0
    %1633 = vmatmul.mubr.bf16.gmra.mrb[0].mxu0 %v1485
    %v1634 = vpop.f32.mrb[0].mxu0
    %v1635 = vadd.f32 0.0, %v1634
    %v1636 = vpop.f32.mrb[0].mxu0
    %v1637 = vpop.f32.mrb[0].mxu0
    %v1638 = vadd.f32 0.0, %v1637
    %v1639 = vpop.f32.mrb[0].mxu0
    %1640 = vmatprep.mubr.bf16.mxu0 0
    %1641 = vmatmul.mubr.bf16.gmra.mrb[0].mxu0 %v1486
    %v1642 = vpop.f32.mrb[0].mxu0
    %v1643 = vadd.f32 0.0, %v1642
    %v1644 = vpop.f32.mrb[0].mxu0
    %v1645 = vpop.f32.mrb[0].mxu0
    %v1646 = vadd.f32 0.0, %v1645
    %v1647 = vpop.f32.mrb[0].mxu0
    %1648 = vdwg.mxu0
    %v1649 = vmul.f32 %v1587, 0.5
    %v1650 = vmul.f32 %v1590, 0.5
    %v1651 = vmul.f32 %v1595, 0.5
    %v1652 = vmul.f32 %v1598, 0.5
    %v1653 = vmul.f32 %v1603, 0.5
    %v1654 = vmul.f32 %v1606, 0.5
    %v1655 = vmul.f32 %v1611, 0.5
    %v1656 = vmul.f32 %v1614, 0.5
    %v1657 = vmul.f32 %v1619, 0.5
    %v1658 = vmul.f32 %v1622, 0.5
    %v1659 = vmul.f32 %v1627, 0.5
    %v1660 = vmul.f32 %v1630, 0.5
    %v1661 = vmul.f32 %v1635, 0.5
    %v1662 = vmul.f32 %v1638, 0.5
    %v1663 = vmul.f32 %v1643, 0.5
    %v1664 = vmul.f32 %v1646, 0.5
    %v1665 = vtanh.pop %v1649
    %v1666 = vtanh.pop %v1650
    %v1667 = vtanh.pop %v1651
    %v1668 = vtanh.pop %v1652
    %v1669 = vtanh.pop %v1653
    %v1670 = vtanh.pop %v1654
    %v1671 = vtanh.pop %v1655
    %v1672 = vtanh.pop %v1656
    %v1673 = vtanh.pop %v1657
    %v1674 = vtanh.pop %v1658
    %v1675 = vtanh.pop %v1659
    %v1676 = vtanh.pop %v1660
    %v1677 = vtanh.pop %v1661
    %v1678 = vtanh.pop %v1662
    %v1679 = vtanh.pop %v1663
    %v1680 = vtanh.pop %v1664
    %v1681 = vadd.f32 %v1665, 1.0
    %v1682 = vadd.f32 %v1666, 1.0
    %v1683 = vadd.f32 %v1667, 1.0
    %v1684 = vadd.f32 %v1668, 1.0
    %v1685 = vadd.f32 %v1669, 1.0
    %v1686 = vadd.f32 %v1670, 1.0
    %v1687 = vadd.f32 %v1671, 1.0
    %v1688 = vadd.f32 %v1672, 1.0
    %v1689 = vadd.f32 %v1673, 1.0
    %v1690 = vadd.f32 %v1674, 1.0
    %v1691 = vadd.f32 %v1675, 1.0
    %v1692 = vadd.f32 %v1676, 1.0
    %v1693 = vadd.f32 %v1677, 1.0
    %v1694 = vadd.f32 %v1678, 1.0
    %v1695 = vadd.f32 %v1679, 1.0
    %v1696 = vadd.f32 %v1680, 1.0
    %v1697 = vmul.f32 %v1681, 0.5
    %v1698 = vmul.f32 %v1682, 0.5
    %v1699 = vmul.f32 %v1683, 0.5
    %v1700 = vmul.f32 %v1684, 0.5
    %v1701 = vmul.f32 %v1685, 0.5
    %v1702 = vmul.f32 %v1686, 0.5
    %v1703 = vmul.f32 %v1687, 0.5
    %v1704 = vmul.f32 %v1688, 0.5
    %v1705 = vmul.f32 %v1689, 0.5
    %v1706 = vmul.f32 %v1690, 0.5
    %v1707 = vmul.f32 %v1691, 0.5
    %v1708 = vmul.f32 %v1692, 0.5
    %v1709 = vmul.f32 %v1693, 0.5
    %v1710 = vmul.f32 %v1694, 0.5
    %v1711 = vmul.f32 %v1695, 0.5
    %v1712 = vmul.f32 %v1696, 0.5
    %v1713 = vmul.f32 %v1587, %v1697
    %v1714 = vmul.f32 %v1590, %v1698
    %v1715 = vmul.f32 %v1595, %v1699
    %v1716 = vmul.f32 %v1598, %v1700
    %v1717 = vmul.f32 %v1603, %v1701
    %v1718 = vmul.f32 %v1606, %v1702
    %v1719 = vmul.f32 %v1611, %v1703
    %v1720 = vmul.f32 %v1614, %v1704
    %v1721 = vmul.f32 %v1619, %v1705
    %v1722 = vmul.f32 %v1622, %v1706
    %v1723 = vmul.f32 %v1627, %v1707
    %v1724 = vmul.f32 %v1630, %v1708
    %v1725 = vmul.f32 %v1635, %v1709
    %v1726 = vmul.f32 %v1638, %v1710
    %v1727 = vmul.f32 %v1643, %v1711
    %v1728 = vmul.f32 %v1646, %v1712
    %v1729 = vpack.c.bf16 %v1714, %v1713
    %v1730 = vpack.c.bf16 %v1716, %v1715
    %v1731 = vpack.c.bf16 %v1718, %v1717
    %v1732 = vpack.c.bf16 %v1720, %v1719
    %v1733 = vpack.c.bf16 %v1722, %v1721
    %v1734 = vpack.c.bf16 %v1724, %v1723
    %v1735 = vpack.c.bf16 %v1726, %v1725
    %v1736 = vpack.c.bf16 %v1728, %v1727
    %v1737 = vld [vmem:[#allocation10] sm:$0xf]
    %v1738 = vld [vmem:[#allocation10 + $0x4] sm:$0xf]
    %v1739 = vld [vmem:[#allocation10 + $0x8] sm:$0xf]
    %v1740 = vld [vmem:[#allocation10 + $0xc] sm:$0xf]
    %v1741 = vld [vmem:[#allocation10 + $0x10] sm:$0xf]
    %v1742 = vld [vmem:[#allocation10 + $0x14] sm:$0xf]
    %v1743 = vld [vmem:[#allocation10 + $0x18] sm:$0xf]
    %v1744 = vld [vmem:[#allocation10 + $0x1c] sm:$0xf]
    %v1745 = vld [vmem:[#allocation10 + $0x20] sm:$0xf]
    %v1746 = vld [vmem:[#allocation10 + $0x24] sm:$0xf]
    %v1747 = vld [vmem:[#allocation10 + $0x28] sm:$0xf]
    %v1748 = vld [vmem:[#allocation10 + $0x2c] sm:$0xf]
    %v1749 = vld [vmem:[#allocation10 + $0x30] sm:$0xf]
    %v1750 = vld [vmem:[#allocation10 + $0x34] sm:$0xf]
    %v1751 = vld [vmem:[#allocation10 + $0x38] sm:$0xf]
    %v1752 = vld [vmem:[#allocation10 + $0x3c] sm:$0xf]
    %v1753 = vld [vmem:[%s8] sm:$0x1]
    %v1755 = vlaneseq
    %v1756 = vshrl.u32 %v1755, 7
    %v1757 = vsub.s32 0, %v1756
    %v1758 = vrot.slane %v1753, %v1757
    %v1776 = vunpack.c.l.b16 %v1737
    %v1777 = vunpack.c.l.b16 %v1738
    %v1778 = vunpack.c.l.b16 %v1739
    %v1779 = vunpack.c.l.b16 %v1740
    %v1780 = vunpack.c.l.b16 %v1741
    %v1781 = vunpack.c.l.b16 %v1742
    %v1782 = vunpack.c.l.b16 %v1743
    %v1783 = vunpack.c.l.b16 %v1744
    %v1784 = vunpack.c.l.b16 %v1745
    %v1785 = vunpack.c.l.b16 %v1746
    %v1786 = vunpack.c.l.b16 %v1747
    %v1787 = vunpack.c.l.b16 %v1748
    %v1788 = vunpack.c.l.b16 %v1749
    %v1789 = vunpack.c.l.b16 %v1750
    %v1790 = vunpack.c.l.b16 %v1751
    %v1791 = vunpack.c.l.b16 %v1752
    %v1792 = vpack.c.b16 %v1777, %v1776
    %v1793 = vpack.c.b16 %v1779, %v1778
    %v1794 = vpack.c.b16 %v1781, %v1780
    %v1795 = vpack.c.b16 %v1783, %v1782
    %v1796 = vpack.c.b16 %v1785, %v1784
    %v1797 = vpack.c.b16 %v1787, %v1786
    %v1798 = vpack.c.b16 %v1789, %v1788
    %v1799 = vpack.c.b16 %v1791, %v1790
    %1808 = vmatprep.subr.bf16.mxu0 0
    %1809 = vmatpush1.bf16.msra.mxu0 %v1792
    %1810 = vmatprep.subr.bf16.mxu0 0
    %1811 = vmatpush1.bf16.msra.mxu0 %v1793
    %1812 = vmatprep.subr.bf16.mxu0 0
    %1813 = vmatpush1.bf16.msra.mxu0 %v1794
    %1814 = vmatprep.subr.bf16.mxu0 0
    %1815 = vmatpush1.bf16.msra.mxu0 %v1795
    %1816 = vmatprep.subr.bf16.mxu0 0
    %1817 = vmatpush1.bf16.msra.mxu0 %v1796
    %1818 = vmatprep.subr.bf16.mxu0 0
    %1819 = vmatpush1.bf16.msra.mxu0 %v1797
    %1820 = vmatprep.subr.bf16.mxu0 0
    %1821 = vmatpush1.bf16.msra.mxu0 %v1798
    %1822 = vmatprep.subr.bf16.mxu0 0
    %1823 = vmatpush1.bf16.msra.mxu0 %v1799
    %1824 = vmatprep.subr.bf16.mxu0 0
    %1825 = vmatpush1.bf16.msra.mxu0 0
    %1826 = vmatprep.subr.bf16.mxu0 0
    %1827 = vmatpush1.bf16.msra.mxu0 0
    %1828 = vmatprep.subr.bf16.mxu0 0
    %1829 = vmatpush1.bf16.msra.mxu0 0
    %1830 = vmatprep.subr.bf16.mxu0 0
    %1831 = vmatpush1.bf16.msra.mxu0 0
    %1832 = vmatprep.subr.bf16.mxu0 0
    %1833 = vmatpush1.bf16.msra.mxu0 0
    %1834 = vmatprep.subr.bf16.mxu0 0
    %1835 = vmatpush1.bf16.msra.mxu0 0
    %1836 = vmatprep.subr.bf16.mxu0 0
    %1837 = vmatpush1.bf16.msra.mxu0 0
    %1838 = vmatprep.subr.bf16.mxu0 0
    %1839 = vmatpush1.bf16.msra.mxu0 0
    %1840 = vmatprep.mubr.bf16.mxu0 0
    %1841 = vmatmul.mubr.bf16.gmra.mrb[0].mxu0 %v1729
    %v1842 = vpop.f32.mrb[0].mxu0
    %v1843 = vadd.f32 %v1758, %v1842
    %v1844 = vpop.f32.mrb[0].mxu0
    %v1845 = vpop.f32.mrb[0].mxu0
    %v1846 = vadd.f32 %v1758, %v1845
    %v1847 = vpop.f32.mrb[0].mxu0
    %1848 = vmatprep.mubr.bf16.mxu0 0
    %1849 = vmatmul.mubr.bf16.gmra.mrb[0].mxu0 %v1730
    %v1850 = vpop.f32.mrb[0].mxu0
    %v1851 = vadd.f32 %v1758, %v1850
    %v1852 = vpop.f32.mrb[0].mxu0
    %v1853 = vpop.f32.mrb[0].mxu0
    %v1854 = vadd.f32 %v1758, %v1853
    %v1855 = vpop.f32.mrb[0].mxu0
    %1856 = vmatprep.mubr.bf16.mxu0 0
    %1857 = vmatmul.mubr.bf16.gmra.mrb[0].mxu0 %v1731
    %v1858 = vpop.f32.mrb[0].mxu0
    %v1859 = vadd.f32 %v1758, %v1858
    %v1860 = vpop.f32.mrb[0].mxu0
    %v1861 = vpop.f32.mrb[0].mxu0
    %v1862 = vadd.f32 %v1758, %v1861
    %v1863 = vpop.f32.mrb[0].mxu0
    %1864 = vmatprep.mubr.bf16.mxu0 0
    %1865 = vmatmul.mubr.bf16.gmra.mrb[0].mxu0 %v1732
    %v1866 = vpop.f32.mrb[0].mxu0
    %v1867 = vadd.f32 %v1758, %v1866
    %v1868 = vpop.f32.mrb[0].mxu0
    %v1869 = vpop.f32.mrb[0].mxu0
    %v1870 = vadd.f32 %v1758, %v1869
    %v1871 = vpop.f32.mrb[0].mxu0
    %1872 = vmatprep.mubr.bf16.mxu0 0
    %1873 = vmatmul.mubr.bf16.gmra.mrb[0].mxu0 %v1733
    %v1874 = vpop.f32.mrb[0].mxu0
    %v1875 = vadd.f32 %v1758, %v1874
    %v1876 = vpop.f32.mrb[0].mxu0
    %v1877 = vpop.f32.mrb[0].mxu0
    %v1878 = vadd.f32 %v1758, %v1877
    %v1879 = vpop.f32.mrb[0].mxu0
    %1880 = vmatprep.mubr.bf16.mxu0 0
    %1881 = vmatmul.mubr.bf16.gmra.mrb[0].mxu0 %v1734
    %v1882 = vpop.f32.mrb[0].mxu0
    %v1883 = vadd.f32 %v1758, %v1882
    %v1884 = vpop.f32.mrb[0].mxu0
    %v1885 = vpop.f32.mrb[0].mxu0
    %v1886 = vadd.f32 %v1758, %v1885
    %v1887 = vpop.f32.mrb[0].mxu0
    %1888 = vmatprep.mubr.bf16.mxu0 0
    %1889 = vmatmul.mubr.bf16.gmra.mrb[0].mxu0 %v1735
    %v1890 = vpop.f32.mrb[0].mxu0
    %v1891 = vadd.f32 %v1758, %v1890
    %v1892 = vpop.f32.mrb[0].mxu0
    %v1893 = vpop.f32.mrb[0].mxu0
    %v1894 = vadd.f32 %v1758, %v1893
    %v1895 = vpop.f32.mrb[0].mxu0
    %1896 = vmatprep.mubr.bf16.mxu0 0
    %1897 = vmatmul.mubr.bf16.gmra.mrb[0].mxu0 %v1736
    %v1898 = vpop.f32.mrb[0].mxu0
    %v1899 = vadd.f32 %v1758, %v1898
    %v1900 = vpop.f32.mrb[0].mxu0
    %v1901 = vpop.f32.mrb[0].mxu0
    %v1902 = vadd.f32 %v1758, %v1901
    %v1903 = vpop.f32.mrb[0].mxu0
    %1904 = vdwg.mxu0
    %1905 = vmax.xlane.f32.xlu0 %v1843
    %v1906 = vpop.xlane.xlu0 %1905
    %1907 = vmax.xlane.f32.xlu0 %v1846
    %v1908 = vpop.xlane.xlu0 %1907
    %1909 = vmax.xlane.f32.xlu0 %v1851
    %v1910 = vpop.xlane.xlu0 %1909
    %1911 = vmax.xlane.f32.xlu0 %v1854
    %v1912 = vpop.xlane.xlu0 %1911
    %1913 = vmax.xlane.f32.xlu0 %v1859
    %v1914 = vpop.xlane.xlu0 %1913
    %1915 = vmax.xlane.f32.xlu0 %v1862
    %v1916 = vpop.xlane.xlu0 %1915
    %1917 = vmax.xlane.f32.xlu0 %v1867
    %v1918 = vpop.xlane.xlu0 %1917
    %1919 = vmax.xlane.f32.xlu0 %v1870
    %v1920 = vpop.xlane.xlu0 %1919
    %1921 = vmax.xlane.f32.xlu0 %v1875
    %v1922 = vpop.xlane.xlu0 %1921
    %1923 = vmax.xlane.f32.xlu0 %v1878
    %v1924 = vpop.xlane.xlu0 %1923
    %1925 = vmax.xlane.f32.xlu0 %v1883
    %v1926 = vpop.xlane.xlu0 %1925
    %1927 = vmax.xlane.f32.xlu0 %v1886
    %v1928 = vpop.xlane.xlu0 %1927
    %1929 = vmax.xlane.f32.xlu0 %v1891
    %v1930 = vpop.xlane.xlu0 %1929
    %1931 = vmax.xlane.f32.xlu0 %v1894
    %v1932 = vpop.xlane.xlu0 %1931
    %1933 = vmax.xlane.f32.xlu0 %v1899
    %v1934 = vpop.xlane.xlu0 %1933
    %1935 = vmax.xlane.f32.xlu0 %v1902
    %v1936 = vpop.xlane.xlu0 %1935
    %v1937 = vsub.f32 %v1843, %v1906
    %v1938 = vsub.f32 %v1846, %v1908
    %v1939 = vsub.f32 %v1851, %v1910
    %v1940 = vsub.f32 %v1854, %v1912
    %v1941 = vsub.f32 %v1859, %v1914
    %v1942 = vsub.f32 %v1862, %v1916
    %v1943 = vsub.f32 %v1867, %v1918
    %v1944 = vsub.f32 %v1870, %v1920
    %v1945 = vsub.f32 %v1875, %v1922
    %v1946 = vsub.f32 %v1878, %v1924
    %v1947 = vsub.f32 %v1883, %v1926
    %v1948 = vsub.f32 %v1886, %v1928
    %v1949 = vsub.f32 %v1891, %v1930
    %v1950 = vsub.f32 %v1894, %v1932
    %v1951 = vsub.f32 %v1899, %v1934
    %v1952 = vsub.f32 %v1902, %v1936
    %v1953 = vmul.f32 %v1937, 1.442695
    %v1954 = vpow.pop %v1953
    %v1955 = vmul.f32 %v1938, 1.442695
    %v1956 = vpow.pop %v1955
    %v1957 = vmul.f32 %v1939, 1.442695
    %v1958 = vpow.pop %v1957
    %v1959 = vmul.f32 %v1940, 1.442695
    %v1960 = vpow.pop %v1959
    %v1961 = vmul.f32 %v1941, 1.442695
    %v1962 = vpow.pop %v1961
    %v1963 = vmul.f32 %v1942, 1.442695
    %v1964 = vpow.pop %v1963
    %v1965 = vmul.f32 %v1943, 1.442695
    %v1966 = vpow.pop %v1965
    %v1967 = vmul.f32 %v1944, 1.442695
    %v1968 = vpow.pop %v1967
    %v1969 = vmul.f32 %v1945, 1.442695
    %v1970 = vpow.pop %v1969
    %v1971 = vmul.f32 %v1946, 1.442695
    %v1972 = vpow.pop %v1971
    %v1973 = vmul.f32 %v1947, 1.442695
    %v1974 = vpow.pop %v1973
    %v1975 = vmul.f32 %v1948, 1.442695
    %v1976 = vpow.pop %v1975
    %v1977 = vmul.f32 %v1949, 1.442695
    %v1978 = vpow.pop %v1977
    %v1979 = vmul.f32 %v1950, 1.442695
    %v1980 = vpow.pop %v1979
    %v1981 = vmul.f32 %v1951, 1.442695
    %v1982 = vpow.pop %v1981
    %v1983 = vmul.f32 %v1952, 1.442695
    %v1984 = vpow.pop %v1983
    %1985 = vadd.xlane.f32.xlu0 %v1954
    %v1986 = vpop.xlane.xlu0 %1985
    %1987 = vadd.xlane.f32.xlu0 %v1956
    %v1988 = vpop.xlane.xlu0 %1987
    %1989 = vadd.xlane.f32.xlu0 %v1958
    %v1990 = vpop.xlane.xlu0 %1989
    %1991 = vadd.xlane.f32.xlu0 %v1960
    %v1992 = vpop.xlane.xlu0 %1991
    %1993 = vadd.xlane.f32.xlu0 %v1962
    %v1994 = vpop.xlane.xlu0 %1993
    %1995 = vadd.xlane.f32.xlu0 %v1964
    %v1996 = vpop.xlane.xlu0 %1995
    %1997 = vadd.xlane.f32.xlu0 %v1966
    %v1998 = vpop.xlane.xlu0 %1997
    %1999 = vadd.xlane.f32.xlu0 %v1968
    %v2000 = vpop.xlane.xlu0 %1999
    %2001 = vadd.xlane.f32.xlu0 %v1970
    %v2002 = vpop.xlane.xlu0 %2001
    %2003 = vadd.xlane.f32.xlu0 %v1972
    %v2004 = vpop.xlane.xlu0 %2003
    %2005 = vadd.xlane.f32.xlu0 %v1974
    %v2006 = vpop.xlane.xlu0 %2005
    %2007 = vadd.xlane.f32.xlu0 %v1976
    %v2008 = vpop.xlane.xlu0 %2007
    %2009 = vadd.xlane.f32.xlu0 %v1978
    %v2010 = vpop.xlane.xlu0 %2009
    %2011 = vadd.xlane.f32.xlu0 %v1980
    %v2012 = vpop.xlane.xlu0 %2011
    %2013 = vadd.xlane.f32.xlu0 %v1982
    %v2014 = vpop.xlane.xlu0 %2013
    %2015 = vadd.xlane.f32.xlu0 %v1984
    %v2016 = vpop.xlane.xlu0 %2015
    %v2017 = vlog2.pop %v1986
    %v2018 = vmul.f32 %v2017, 0.6931472
    %v2019 = vlog2.pop %v1988
    %v2020 = vmul.f32 %v2019, 0.6931472
    %v2021 = vlog2.pop %v1990
    %v2022 = vmul.f32 %v2021, 0.6931472
    %v2023 = vlog2.pop %v1992
    %v2024 = vmul.f32 %v2023, 0.6931472
    %v2025 = vlog2.pop %v1994
    %v2026 = vmul.f32 %v2025, 0.6931472
    %v2027 = vlog2.pop %v1996
    %v2028 = vmul.f32 %v2027, 0.6931472
    %v2029 = vlog2.pop %v1998
    %v2030 = vmul.f32 %v2029, 0.6931472
    %v2031 = vlog2.pop %v2000
    %v2032 = vmul.f32 %v2031, 0.6931472
    %v2033 = vlog2.pop %v2002
    %v2034 = vmul.f32 %v2033, 0.6931472
    %v2035 = vlog2.pop %v2004
    %v2036 = vmul.f32 %v2035, 0.6931472
    %v2037 = vlog2.pop %v2006
    %v2038 = vmul.f32 %v2037, 0.6931472
    %v2039 = vlog2.pop %v2008
    %v2040 = vmul.f32 %v2039, 0.6931472
    %v2041 = vlog2.pop %v2010
    %v2042 = vmul.f32 %v2041, 0.6931472
    %v2043 = vlog2.pop %v2012
    %v2044 = vmul.f32 %v2043, 0.6931472
    %v2045 = vlog2.pop %v2014
    %v2046 = vmul.f32 %v2045, 0.6931472
    %v2047 = vlog2.pop %v2016
    %v2048 = vmul.f32 %v2047, 0.6931472
    %v2049 = vsub.f32 %v1937, %v2018
    %v2050 = vsub.f32 %v1938, %v2020
    %v2051 = vsub.f32 %v1939, %v2022
    %v2052 = vsub.f32 %v1940, %v2024
    %v2053 = vsub.f32 %v1941, %v2026
    %v2054 = vsub.f32 %v1942, %v2028
    %v2055 = vsub.f32 %v1943, %v2030
    %v2056 = vsub.f32 %v1944, %v2032
    %v2057 = vsub.f32 %v1945, %v2034
    %v2058 = vsub.f32 %v1946, %v2036
    %v2059 = vsub.f32 %v1947, %v2038
    %v2060 = vsub.f32 %v1948, %v2040
    %v2061 = vsub.f32 %v1949, %v2042
    %v2062 = vsub.f32 %v1950, %v2044
    %v2063 = vsub.f32 %v1951, %v2046
    %v2064 = vsub.f32 %v1952, %v2048
    %2065 = vst [vmem:[#allocation11] sm:$0xff] %v2049
    %2066 = vst [vmem:[#allocation11 + $0x8] sm:$0xff] %v2050
    %2067 = vst [vmem:[#allocation11 + $0x10] sm:$0xff] %v2051
    %2068 = vst [vmem:[#allocation11 + $0x18] sm:$0xff] %v2052
    %2069 = vst [vmem:[#allocation11 + $0x20] sm:$0xff] %v2053
    %2070 = vst [vmem:[#allocation11 + $0x28] sm:$0xff] %v2054
    %2071 = vst [vmem:[#allocation11 + $0x30] sm:$0xff] %v2055
    %2072 = vst [vmem:[#allocation11 + $0x38] sm:$0xff] %v2056
    %2073 = vst [vmem:[#allocation11 + $0x40] sm:$0xff] %v2057
    %2074 = vst [vmem:[#allocation11 + $0x48] sm:$0xff] %v2058
    %2075 = vst [vmem:[#allocation11 + $0x50] sm:$0xff] %v2059
    %2076 = vst [vmem:[#allocation11 + $0x58] sm:$0xff] %v2060
    %2077 = vst [vmem:[#allocation11 + $0x60] sm:$0xff] %v2061
    %2078 = vst [vmem:[#allocation11 + $0x68] sm:$0xff] %v2062
    %2079 = vst [vmem:[#allocation11 + $0x70] sm:$0xff] %v2063
    %2080 = vst [vmem:[#allocation11 + $0x78] sm:$0xff] %v2064
    // Predicated region
    $region58: #{tpu_custom_call.1} parent=1 // pred_check
      _
    $region59: #{tpu_custom_call.1} parent=1 // pred_check_branch
      %2082 = sbr.rel (0) target = $region61
    $region60: #{tpu_custom_call.1} parent=1 // pred_region
      %s2084 = ssub.s32 2048, 2048
      %2085 = vsyncadd [#allocation4], %s2084
      %s2086 = sshll.u32 [#allocation11], 4
      %s2087 = int_to_ptr.vmem [resolvable:$true] %s2086
      %2092 = dma.vmem_to_hbm [thread:$0]  %s2087, 2048, %s9, [#allocation4], 128, 128, 8
    $region61: #{tpu_custom_call.1} parent=1 // pred_fallthru
      _
    // Predicated region
    $region62: #{tpu_custom_call.1} parent=1 // pred_check
      _
    $region63: #{tpu_custom_call.1} parent=1 // pred_check_branch
      %2094 = sbr.rel (0) target = $region65
    $region64: #{tpu_custom_call.1} parent=1 // pred_region
      %2095 = dma.done [#allocation4], 2048
    $region65: #{tpu_custom_call.1} parent=1 // pred_fallthru
      _
    %2096 = vsyncpa [#allocation3], 1
    %2097 = vsyncpa [#allocation6], 1
    %2098 = vsyncpa [#allocation9], 1
    %2099 = vsyncpa [#allocation4], 1

</llo_original>
